<compile_context>
chip_gen: v6e
topology: v6e:2x2x1
jax: 0.10.0
libtpu: 0.0.40
codegen_flags: <defaults>
</compile_context>

<pallas_src>
import functools
import math

import jax
import jax.numpy as jnp
from jax import lax
from jax.experimental import pallas as pl
from jax.experimental.pallas import tpu as pltpu

SCALE = math.sqrt(0.5)                 # torch.sqrt(FloatTensor([0.5]))
_VMEM_LIMIT_BYTES = 48 * 1024 * 1024   # fits v7x (64 MiB), > v6e 32 MiB scoped default
_VMEM_BUDGET_BYTES = 40 * 1024 * 1024  # headroom under the limit when picking BB


# ---------------------------------------------------------------------------
# Fused Pallas kernel: token ids -> embedding -> n_layers conv/GLU blocks -> Linear
# ---------------------------------------------------------------------------
def fused_encoder_kernel(ids_ref, emb_ref, w_ref, s_ref, fcw_ref, fcb_ref, out_ref,
                         *, n_layers, K, L, H, Vp, BB):
    """One grid step processes BB sequences end-to-end.

    ids_ref: (BB, L, 1)              token ids (int32)
    emb_ref: (Vp, H)                 embedding table, vocab padded to Vp (bf16)
    w_ref:   (n_layers, K*H, 2*H)    folded conv weights, GLU halves merged (bf16)
    s_ref:   (n_layers, 1, 2*H)      folded conv-bias + BN shift (f32)
    fcw_ref: (H, H)                  final Linear weight, transposed to (in, out) (bf16)
    fcb_ref: (1, H)                  final Linear bias (f32)
    out_ref: (BB, L, H)              output block (f32)
    """
    pad = (K - 1) // 2
    rows = BB * L

    # ---- Embedding fused in-kernel: one-hot (exact 0/1) x bf16 table on the MXU is a
    # bit-exact gather of the bf16 embedding rows; no (B, L, H) HBM round trip.
    ids = ids_ref[...]                                              # (BB, L, 1) int32
    iota = lax.broadcasted_iota(jnp.int32, (BB, L, Vp), 2)
    hot = jnp.where(ids == iota, 1.0, 0.0).astype(jnp.bfloat16)     # (BB, L, Vp)
    x = jnp.dot(hot.reshape(rows, Vp), emb_ref[...],
                preferred_element_type=jnp.float32)                 # (rows, H) f32

    def layer_body(l, x):
        # TODO(synk): training-mode dropout masking not implemented (eval-mode identity).
        x3 = x.reshape(BB, L, H)
        if pad > 0:
            halo = jnp.zeros((BB, pad, H), jnp.float32)
            xp = jnp.concatenate([halo, x3, halo], axis=1)          # (BB, L + 2*pad, H)
        else:
            xp = x3
        # im2col slab: one (rows, K*H) x (K*H, 2H) matmul per layer (merged GLU halves,
        # K*x deeper contraction) instead of 2*K accumulating H-deep dots.
        slab = jnp.concatenate([xp[:, k:k + L, :] for k in range(K)], axis=-1)
        lhs = slab.astype(jnp.bfloat16).reshape(rows, K * H)        # one bf16 cast/layer
        y = jnp.dot(lhs, w_ref[l], preferred_element_type=jnp.float32) + s_ref[l]
        v = y[:, :H]                                                # GLU value half
        g = y[:, H:]                                                # GLU gate half
        return (v * jax.nn.sigmoid(g) + x) * SCALE                  # residual + scale (f32)

    if n_layers <= 4:
        for l in range(n_layers):                                   # static unroll
            x = layer_body(l, x)
    else:
        # Deep stacks: bound live ranges / code size with an in-kernel loop.
        x = lax.fori_loop(0, n_layers, layer_body, x)

    # Final Linear(H, H) fused into the same kernel; single full-tile store.
    y = jnp.dot(x.astype(jnp.bfloat16), fcw_ref[...],
                preferred_element_type=jnp.float32) + fcb_ref[...]
    out_ref[...] = y.reshape(BB, L, H).astype(out_ref.dtype)


# ---------------------------------------------------------------------------
# Block-size selection (rows/step target, >=2 grid steps, VMEM budget)
# ---------------------------------------------------------------------------
def _pick_block_batch(B, L, H, K, n_layers, vocab_p, target_rows, vmem_budget):
    bb = max(1, pl.cdiv(target_rows, L))
    if B >= 2:
        bb = min(bb, B // 2)        # keep >= 2 grid steps so v7x can use both TensorCores
    bb = max(1, min(bb, B))

    weight_bytes = (n_layers * K * H * 2 * H * 2       # merged conv weights (bf16)
                    + n_layers * 2 * H * 4              # folded shifts (f32)
                    + vocab_p * H * 2                    # embedding table (bf16)
                    + H * H * 2 + H * 4)                 # fc weight (bf16) + bias (f32)

    def step_bytes(bb):
        rows = bb * L
        return (2 * bb * L * 4                           # ids block, double buffered
                + 2 * rows * H * 4                       # out block, double buffered
                + rows * K * H * 6                       # im2col slab (f32 + bf16 copy)
                + rows * (vocab_p * 2 + 6 * H * 4)       # one-hot + activation temps
                + 2 * weight_bytes)                      # worst case: double buffered

    while bb > 1 and step_bytes(bb) > vmem_budget:
        bb -= 1
    return bb


# ---------------------------------------------------------------------------
# Wrapper
# ---------------------------------------------------------------------------
def smiles_encoder_forward(smiles, params, *, kernel_size, n_layers,
                           target_rows=1024, vmem_budget_bytes=_VMEM_BUDGET_BYTES):
    assert kernel_size % 2 == 1, "Kernel size must be odd (for now)"
    K = kernel_size
    emb = params["emb_pad"]
    Vp, H = emb.shape
    W, S = params["conv_w"], params["conv_shift"]
    fcw, fcb = params["fc_w_t"], params["fc_b"]
    assert W.shape == (n_layers, K * H, 2 * H)

    smiles = smiles.astype(jnp.int32)
    B, L = smiles.shape

    bb = _pick_block_batch(B, L, H, K, n_layers, Vp, target_rows, vmem_budget_bytes)
    nb = pl.cdiv(B, bb)
    b_pad = nb * bb
    if b_pad != B:
        # Pad the batch instead of collapsing BB for ragged/prime batch sizes;
        # padded rows use token 0 (zero embedding) and are sliced off below.
        smiles = jnp.pad(smiles, ((0, b_pad - B), (0, 0)))
    ids3 = smiles[:, :, None]                                        # (b_pad, L, 1)

    kern = functools.partial(fused_encoder_kernel, n_layers=n_layers,
                             K=K, L=L, H=H, Vp=Vp, BB=bb)

    def build(single_buffer_weights):
        def cspec(shape):
            nd = len(shape)
            imap = lambda i, _nd=nd: (0,) * _nd
            if single_buffer_weights:
                # Constant index_map -> no re-DMA; single buffer halves weight VMEM.
                return pl.BlockSpec(shape, imap, pipeline_mode=pl.Buffered(1))
            return pl.BlockSpec(shape, imap)

        return pl.pallas_call(
            kern,
            out_shape=jax.ShapeDtypeStruct((b_pad, L, H), jnp.float32),
            grid=(nb,),
            in_specs=[
                pl.BlockSpec((bb, L, 1), lambda i: (i, 0, 0)),       # token ids
                cspec((Vp, H)),                                      # embedding table
                cspec((n_layers, K * H, 2 * H)),                     # merged conv weights
                cspec((n_layers, 1, 2 * H)),                         # folded shifts
                cspec((H, H)),                                       # fc weight
                cspec((1, H)),                                       # fc bias
            ],
            out_specs=pl.BlockSpec((bb, L, H), lambda i: (i, 0, 0)),
            compiler_params=pltpu.CompilerParams(
                dimension_semantics=("parallel",),
                vmem_limit_bytes=_VMEM_LIMIT_BYTES),
        )(ids3, emb, W, S, fcw, fcb)

    try:
        out = build(single_buffer_weights=True)
    except Exception:
        # pl.Buffered(1) single-buffering of constant blocks not supported on this
        # jax/libtpu version -- fall back to default double buffering.
        out = build(single_buffer_weights=False)
    return out[:B]


# ---------------------------------------------------------------------------
# Parameter construction: BN/bias folding + merged GLU halves + im2col weight layout
# ---------------------------------------------------------------------------
def init_params(key, vocab_size, hid_dim, n_layers, kernel_size):
    H, K = hid_dim, kernel_size
    eps = 1e-5
    keys = jax.random.split(key, 3 + 6 * n_layers)
    ki = iter(keys)

    emb = jax.random.normal(next(ki), (vocab_size, H), jnp.float32) * 0.1
    emb = emb.at[0].set(0.0)                                         # padding_idx=0
    vp = -(-vocab_size // 8) * 8                                     # pad vocab for layout
    emb_pad = jnp.zeros((vp, H), jnp.float32).at[:vocab_size].set(emb)

    w_list, s_list = [], []
    for _ in range(n_layers):
        # PyTorch Conv1d weight (2H, H, K), bias (2H,), BatchNorm1d(2H) eval stats.
        w = jax.random.normal(next(ki), (2 * H, H, K), jnp.float32) / math.sqrt(H * K)
        b = jax.random.normal(next(ki), (2 * H,), jnp.float32) * 0.01
        gamma = 1.0 + 0.1 * jax.random.normal(next(ki), (2 * H,), jnp.float32)
        beta = 0.1 * jax.random.normal(next(ki), (2 * H,), jnp.float32)
        rmean = 0.1 * jax.random.normal(next(ki), (2 * H,), jnp.float32)
        rvar = 1.0 + 0.1 * jax.random.uniform(next(ki), (2 * H,), jnp.float32)

        s = gamma / jnp.sqrt(rvar + eps)                             # BN(eval) scale
        shift = b * s + beta - rmean * s                             # folded bias + BN shift
        # im2col layout: W[k*H + i, o] = conv_w[o, i, k] * s[o], GLU halves kept merged.
        wm = (jnp.transpose(w, (2, 1, 0)) * s[None, None, :]).reshape(K * H, 2 * H)
        w_list.append(wm.astype(jnp.bfloat16))
        s_list.append(shift.reshape(1, 2 * H))

    fc_w = jax.random.normal(next(ki), (H, H), jnp.float32) / math.sqrt(H)
    fc_b = jax.random.normal(next(ki), (H,), jnp.float32) * 0.01

    return dict(
        emb_pad=emb_pad.astype(jnp.bfloat16),    # (Vp, H) bf16
        conv_w=jnp.stack(w_list),                # (n_layers, K*H, 2H) bf16
        conv_shift=jnp.stack(s_list),            # (n_layers, 1, 2H) f32
        fc_w_t=fc_w.T.astype(jnp.bfloat16),      # (H_in, H_out) bf16
        fc_b=fc_b.reshape(1, H),                 # (1, H) f32
    )


# Pure-JAX reference (same eval-mode math, same bf16 boundaries, no Pallas).
def reference_forward(smiles, params, *, kernel_size, n_layers):
    K = kernel_size
    pad = (K - 1) // 2
    emb = params["emb_pad"].astype(jnp.float32)
    x = jnp.take(emb, smiles, axis=0)                                # (B, L, H)
    B, L, H = x.shape
    for l in range(n_layers):
        xp = jnp.pad(x, ((0, 0), (pad, pad), (0, 0)))
        slab = jnp.concatenate([xp[:, k:k + L, :] for k in range(K)], axis=-1)
        y = jnp.einsum("blk,ko->blo", slab.astype(jnp.bfloat16), params["conv_w"][l],
                       preferred_element_type=jnp.float32) + params["conv_shift"][l]
        v, g = y[..., :H], y[..., H:]
        x = (v * jax.nn.sigmoid(g) + x) * SCALE
    return jnp.einsum("blh,ho->blo", x.astype(jnp.bfloat16), params["fc_w_t"],
                      preferred_element_type=jnp.float32) + params["fc_b"][0]


if __name__ == "__main__":
    # Module hyper-params (small, consistent with __init__).
    vocab_size, hid_dim, n_layers, kernel_size = 20, 32, 2, 3
    B, L = 2, 16

    key = jax.random.PRNGKey(0)
    kp, kx = jax.random.split(key)
    params = init_params(kp, vocab_size, hid_dim, n_layers, kernel_size)
    smiles = jax.random.randint(kx, (B, L), 0, vocab_size, dtype=jnp.int32)

    out = smiles_encoder_forward(smiles, params,
                                 kernel_size=kernel_size, n_layers=n_layers)
    out = jax.block_until_ready(out)

    ref = reference_forward(smiles, params,
                            kernel_size=kernel_size, n_layers=n_layers)
    assert out.shape == (B, L, hid_dim)
    assert jnp.allclose(out, ref, atol=1e-3, rtol=1e-3), "mismatch vs JAX reference"

    print("KERNEL_OK")
</pallas_src>

<mosaic_0001>
module attributes {stable_mosaic.version = 11 : i64} {
  func.func @fused_encoder_kernel(%arg0: i32, %arg1: memref<1x16x1xi32, #tpu.memory_space<vmem>>, %arg2: memref<24x32xbf16, #tpu.memory_space<vmem>>, %arg3: memref<2x96x64xbf16, #tpu.memory_space<vmem>>, %arg4: memref<2x1x64xf32, #tpu.memory_space<vmem>>, %arg5: memref<32x32xbf16, #tpu.memory_space<vmem>>, %arg6: memref<1x32xf32, #tpu.memory_space<vmem>>, %arg7: memref<1x16x32xf32, #tpu.memory_space<vmem>>) attributes {dimension_semantics = [#tpu.dimension_semantics<parallel>], iteration_bounds = array<i64: 2>, scalar_prefetch = 0 : i64, scratch_operands = 0 : i64, tpu.core_type = #tpu.core_type<tc>, window_params = [{transform_indices = @transform_0, window_bounds = array<i64: 1, 16, 1>}, {pipeline_mode = #tpu.pipeline_mode<synchronous>, transform_indices = @transform_1, window_bounds = array<i64: 24, 32>}, {pipeline_mode = #tpu.pipeline_mode<synchronous>, transform_indices = @transform_2, window_bounds = array<i64: 2, 96, 64>}, {pipeline_mode = #tpu.pipeline_mode<synchronous>, transform_indices = @transform_3, window_bounds = array<i64: 2, 1, 64>}, {pipeline_mode = #tpu.pipeline_mode<synchronous>, transform_indices = @transform_4, window_bounds = array<i64: 32, 32>}, {pipeline_mode = #tpu.pipeline_mode<synchronous>, transform_indices = @transform_5, window_bounds = array<i64: 1, 32>}, {transform_indices = @transform_6, window_bounds = array<i64: 1, 16, 32>}]} {
    %c0 = arith.constant 0 : index
    %c0_0 = arith.constant 0 : index
    %c0_1 = arith.constant 0 : index
    %0 = vector.load %arg1[%c0, %c0_0, %c0_1] : memref<1x16x1xi32, #tpu.memory_space<vmem>>, vector<1x16x1xi32>
    %1 = tpu.iota {dimensions = array<i32: 2>} : vector<1x16x24xi32>
    %2 = vector.broadcast %0 : vector<1x16x1xi32> to vector<1x16x24xi32>
    %3 = arith.cmpi eq, %2, %1 : vector<1x16x24xi32>
    %cst = arith.constant 1.000000e+00 : f32
    %cst_2 = arith.constant 0.000000e+00 : f32
    %4 = vector.broadcast %cst : f32 to vector<1x16x24xf32>
    %5 = vector.broadcast %cst_2 : f32 to vector<1x16x24xf32>
    %6 = arith.select %3, %4, %5 : vector<1x16x24xi1>, vector<1x16x24xf32>
    %7 = arith.truncf %6 : vector<1x16x24xf32> to vector<1x16x24xbf16>
    %8 = vector.shape_cast %7 : vector<1x16x24xbf16> to vector<16x24xbf16>
    %c0_3 = arith.constant 0 : index
    %c0_4 = arith.constant 0 : index
    %9 = vector.load %arg2[%c0_3, %c0_4] : memref<24x32xbf16, #tpu.memory_space<vmem>>, vector<24x32xbf16>
    %cst_5 = arith.constant dense<0.000000e+00> : vector<16x32xf32>
    %10 = tpu.matmul %8, %9, %cst_5 {dimension_numbers = #tpu.dot_dimension_numbers<[1], [0], [0], [1], [0, 0, 1, 1], [], []>} : vector<16x24xbf16>, vector<24x32xbf16>, vector<16x32xf32> -> vector<16x32xf32>
    %11 = vector.shape_cast %10 : vector<16x32xf32> to vector<1x16x32xf32>
    %cst_6 = arith.constant 0.000000e+00 : f32
    %12 = vector.broadcast %cst_6 : f32 to vector<1x1x32xf32>
    %13 = tpu.concatenate %12, %11, %12 in 1 : vector<1x1x32xf32>, vector<1x16x32xf32>, vector<1x1x32xf32> -> vector<1x18x32xf32>
    %14 = vector.extract_strided_slice %13 {offsets = [0, 0, 0], sizes = [1, 16, 32], strides = [1, 1, 1]} : vector<1x18x32xf32> to vector<1x16x32xf32>
    %15 = vector.extract_strided_slice %13 {offsets = [0, 1, 0], sizes = [1, 16, 32], strides = [1, 1, 1]} : vector<1x18x32xf32> to vector<1x16x32xf32>
    %16 = vector.extract_strided_slice %13 {offsets = [0, 2, 0], sizes = [1, 16, 32], strides = [1, 1, 1]} : vector<1x18x32xf32> to vector<1x16x32xf32>
    %17 = tpu.concatenate %14, %15, %16 in 2 : vector<1x16x32xf32>, vector<1x16x32xf32>, vector<1x16x32xf32> -> vector<1x16x96xf32>
    %18 = arith.truncf %17 : vector<1x16x96xf32> to vector<1x16x96xbf16>
    %19 = vector.shape_cast %18 : vector<1x16x96xbf16> to vector<16x96xbf16>
    %c0_7 = arith.constant 0 : index
    %c0_8 = arith.constant 0 : index
    %c0_9 = arith.constant 0 : index
    %20 = vector.load %arg3[%c0_7, %c0_8, %c0_9] : memref<2x96x64xbf16, #tpu.memory_space<vmem>>, vector<1x96x64xbf16>
    %21 = vector.shape_cast %20 : vector<1x96x64xbf16> to vector<96x64xbf16>
    %cst_10 = arith.constant dense<0.000000e+00> : vector<16x64xf32>
    %22 = tpu.matmul %19, %21, %cst_10 {dimension_numbers = #tpu.dot_dimension_numbers<[1], [0], [0], [1], [0, 0, 1, 1], [], []>} : vector<16x96xbf16>, vector<96x64xbf16>, vector<16x64xf32> -> vector<16x64xf32>
    %c0_11 = arith.constant 0 : index
    %c0_12 = arith.constant 0 : index
    %c0_13 = arith.constant 0 : index
    %23 = vector.load %arg4[%c0_11, %c0_12, %c0_13] : memref<2x1x64xf32, #tpu.memory_space<vmem>>, vector<1x1x64xf32>
    %24 = vector.shape_cast %23 : vector<1x1x64xf32> to vector<1x64xf32>
    %25 = vector.broadcast %24 : vector<1x64xf32> to vector<16x64xf32>
    %26 = arith.addf %22, %25 : vector<16x64xf32>
    %27 = vector.extract_strided_slice %26 {offsets = [0, 0], sizes = [16, 32], strides = [1, 1]} : vector<16x64xf32> to vector<16x32xf32>
    %28 = vector.extract_strided_slice %26 {offsets = [0, 32], sizes = [16, 32], strides = [1, 1]} : vector<16x64xf32> to vector<16x32xf32>
    %29 = arith.negf %28 : vector<16x32xf32>
    %30 = math.exp %29 : vector<16x32xf32>
    %cst_14 = arith.constant 1.000000e+00 : f32
    %31 = vector.broadcast %cst_14 : f32 to vector<16x32xf32>
    %32 = arith.addf %31, %30 : vector<16x32xf32>
    %33 = arith.divf %31, %32 : vector<16x32xf32>
    %34 = arith.mulf %27, %33 : vector<16x32xf32>
    %35 = arith.addf %34, %10 : vector<16x32xf32>
    %cst_15 = arith.constant 0.707106769 : f32
    %36 = vector.broadcast %cst_15 : f32 to vector<16x32xf32>
    %37 = arith.mulf %35, %36 : vector<16x32xf32>
    %38 = vector.shape_cast %37 : vector<16x32xf32> to vector<1x16x32xf32>
    %cst_16 = arith.constant 0.000000e+00 : f32
    %39 = vector.broadcast %cst_16 : f32 to vector<1x1x32xf32>
    %40 = tpu.concatenate %39, %38, %39 in 1 : vector<1x1x32xf32>, vector<1x16x32xf32>, vector<1x1x32xf32> -> vector<1x18x32xf32>
    %41 = vector.extract_strided_slice %40 {offsets = [0, 0, 0], sizes = [1, 16, 32], strides = [1, 1, 1]} : vector<1x18x32xf32> to vector<1x16x32xf32>
    %42 = vector.extract_strided_slice %40 {offsets = [0, 1, 0], sizes = [1, 16, 32], strides = [1, 1, 1]} : vector<1x18x32xf32> to vector<1x16x32xf32>
    %43 = vector.extract_strided_slice %40 {offsets = [0, 2, 0], sizes = [1, 16, 32], strides = [1, 1, 1]} : vector<1x18x32xf32> to vector<1x16x32xf32>
    %44 = tpu.concatenate %41, %42, %43 in 2 : vector<1x16x32xf32>, vector<1x16x32xf32>, vector<1x16x32xf32> -> vector<1x16x96xf32>
    %45 = arith.truncf %44 : vector<1x16x96xf32> to vector<1x16x96xbf16>
    %46 = vector.shape_cast %45 : vector<1x16x96xbf16> to vector<16x96xbf16>
    %c1 = arith.constant 1 : index
    %c0_17 = arith.constant 0 : index
    %c0_18 = arith.constant 0 : index
    %47 = vector.load %arg3[%c1, %c0_17, %c0_18] : memref<2x96x64xbf16, #tpu.memory_space<vmem>>, vector<1x96x64xbf16>
    %48 = vector.shape_cast %47 : vector<1x96x64xbf16> to vector<96x64xbf16>
    %cst_19 = arith.constant dense<0.000000e+00> : vector<16x64xf32>
    %49 = tpu.matmul %46, %48, %cst_19 {dimension_numbers = #tpu.dot_dimension_numbers<[1], [0], [0], [1], [0, 0, 1, 1], [], []>} : vector<16x96xbf16>, vector<96x64xbf16>, vector<16x64xf32> -> vector<16x64xf32>
    %c1_20 = arith.constant 1 : index
    %c0_21 = arith.constant 0 : index
    %c0_22 = arith.constant 0 : index
    %50 = vector.load %arg4[%c1_20, %c0_21, %c0_22] : memref<2x1x64xf32, #tpu.memory_space<vmem>>, vector<1x1x64xf32>
    %51 = vector.shape_cast %50 : vector<1x1x64xf32> to vector<1x64xf32>
    %52 = vector.broadcast %51 : vector<1x64xf32> to vector<16x64xf32>
    %53 = arith.addf %49, %52 : vector<16x64xf32>
    %54 = vector.extract_strided_slice %53 {offsets = [0, 0], sizes = [16, 32], strides = [1, 1]} : vector<16x64xf32> to vector<16x32xf32>
    %55 = vector.extract_strided_slice %53 {offsets = [0, 32], sizes = [16, 32], strides = [1, 1]} : vector<16x64xf32> to vector<16x32xf32>
    %56 = arith.negf %55 : vector<16x32xf32>
    %57 = math.exp %56 : vector<16x32xf32>
    %cst_23 = arith.constant 1.000000e+00 : f32
    %58 = vector.broadcast %cst_23 : f32 to vector<16x32xf32>
    %59 = arith.addf %58, %57 : vector<16x32xf32>
    %60 = arith.divf %58, %59 : vector<16x32xf32>
    %61 = arith.mulf %54, %60 : vector<16x32xf32>
    %62 = arith.addf %61, %37 : vector<16x32xf32>
    %cst_24 = arith.constant 0.707106769 : f32
    %63 = vector.broadcast %cst_24 : f32 to vector<16x32xf32>
    %64 = arith.mulf %62, %63 : vector<16x32xf32>
    %65 = arith.truncf %64 : vector<16x32xf32> to vector<16x32xbf16>
    %c0_25 = arith.constant 0 : index
    %c0_26 = arith.constant 0 : index
    %66 = vector.load %arg5[%c0_25, %c0_26] : memref<32x32xbf16, #tpu.memory_space<vmem>>, vector<32x32xbf16>
    %cst_27 = arith.constant dense<0.000000e+00> : vector<16x32xf32>
    %67 = tpu.matmul %65, %66, %cst_27 {dimension_numbers = #tpu.dot_dimension_numbers<[1], [0], [0], [1], [0, 0, 1, 1], [], []>} : vector<16x32xbf16>, vector<32x32xbf16>, vector<16x32xf32> -> vector<16x32xf32>
    %c0_28 = arith.constant 0 : index
    %c0_29 = arith.constant 0 : index
    %68 = vector.load %arg6[%c0_28, %c0_29] : memref<1x32xf32, #tpu.memory_space<vmem>>, vector<1x32xf32>
    %69 = vector.broadcast %68 : vector<1x32xf32> to vector<16x32xf32>
    %70 = arith.addf %67, %69 : vector<16x32xf32>
    %71 = vector.shape_cast %70 : vector<16x32xf32> to vector<1x16x32xf32>
    %c0_30 = arith.constant 0 : index
    %c0_31 = arith.constant 0 : index
    %c0_32 = arith.constant 0 : index
    %72 = vector.load %arg7[%c0_30, %c0_31, %c0_32] : memref<1x16x32xf32, #tpu.memory_space<vmem>>, vector<1x16x32xf32>
    tpu.vector_store %arg7[%c0_30, %c0_31, %c0_32], %71 {strides = array<i32>} : memref<1x16x32xf32, #tpu.memory_space<vmem>>, vector<1x16x32xf32>,
    return
  }
  func.func @transform_0(%arg0: i32) -> (i32, i32, i32) {
    %c0_i32 = arith.constant 0 : i32
    %c0_i32_0 = arith.constant 0 : i32
    %c0_i32_1 = arith.constant 0 : i32
    return %arg0, %c0_i32, %c0_i32_0 : i32, i32, i32
  }
  func.func @transform_1(%arg0: i32) -> (i32, i32) {
    %c0_i32 = arith.constant 0 : i32
    %c0_i32_0 = arith.constant 0 : i32
    %c0_i32_1 = arith.constant 0 : i32
    return %c0_i32, %c0_i32_0 : i32, i32
  }
  func.func @transform_2(%arg0: i32) -> (i32, i32, i32) {
    %c0_i32 = arith.constant 0 : i32
    %c0_i32_0 = arith.constant 0 : i32
    %c0_i32_1 = arith.constant 0 : i32
    %c0_i32_2 = arith.constant 0 : i32
    return %c0_i32, %c0_i32_0, %c0_i32_1 : i32, i32, i32
  }
  func.func @transform_3(%arg0: i32) -> (i32, i32, i32) {
    %c0_i32 = arith.constant 0 : i32
    %c0_i32_0 = arith.constant 0 : i32
    %c0_i32_1 = arith.constant 0 : i32
    %c0_i32_2 = arith.constant 0 : i32
    return %c0_i32, %c0_i32_0, %c0_i32_1 : i32, i32, i32
  }
  func.func @transform_4(%arg0: i32) -> (i32, i32) {
    %c0_i32 = arith.constant 0 : i32
    %c0_i32_0 = arith.constant 0 : i32
    %c0_i32_1 = arith.constant 0 : i32
    return %c0_i32, %c0_i32_0 : i32, i32
  }
  func.func @transform_5(%arg0: i32) -> (i32, i32) {
    %c0_i32 = arith.constant 0 : i32
    %c0_i32_0 = arith.constant 0 : i32
    %c0_i32_1 = arith.constant 0 : i32
    return %c0_i32, %c0_i32_0 : i32, i32
  }
  func.func @transform_6(%arg0: i32) -> (i32, i32, i32) {
    %c0_i32 = arith.constant 0 : i32
    %c0_i32_0 = arith.constant 0 : i32
    %c0_i32_1 = arith.constant 0 : i32
    return %arg0, %c0_i32, %c0_i32_0 : i32, i32, i32
  }
}

module attributes {stable_mosaic.version = 11 : i64} {
  func.func @fused_encoder_kernel(%arg0: i32, %arg1: memref<1x16x1xi32, #tpu.memory_space<vmem>>, %arg2: memref<24x32xbf16, #tpu.memory_space<vmem>>, %arg3: memref<2x96x64xbf16, #tpu.memory_space<vmem>>, %arg4: memref<2x1x64xf32, #tpu.memory_space<vmem>>, %arg5: memref<32x32xbf16, #tpu.memory_space<vmem>>, %arg6: memref<1x32xf32, #tpu.memory_space<vmem>>, %arg7: memref<1x16x32xf32, #tpu.memory_space<vmem>>) attributes {dimension_semantics = [#tpu.dimension_semantics<parallel>], iteration_bounds = array<i64: 2>, scalar_prefetch = 0 : i64, scratch_operands = 0 : i64, tpu.core_type = #tpu.core_type<tc>, window_params = [{transform_indices = @transform_0, window_bounds = array<i64: 1, 16, 1>}, {pipeline_mode = #tpu.pipeline_mode<synchronous>, transform_indices = @transform_1, window_bounds = array<i64: 24, 32>}, {pipeline_mode = #tpu.pipeline_mode<synchronous>, transform_indices = @transform_2, window_bounds = array<i64: 2, 96, 64>}, {pipeline_mode = #tpu.pipeline_mode<synchronous>, transform_indices = @transform_3, window_bounds = array<i64: 2, 1, 64>}, {pipeline_mode = #tpu.pipeline_mode<synchronous>, transform_indices = @transform_4, window_bounds = array<i64: 32, 32>}, {pipeline_mode = #tpu.pipeline_mode<synchronous>, transform_indices = @transform_5, window_bounds = array<i64: 1, 32>}, {transform_indices = @transform_6, window_bounds = array<i64: 1, 16, 32>}]} {
    %c0 = arith.constant 0 : index
    %c0_0 = arith.constant 0 : index
    %c0_1 = arith.constant 0 : index
    %0 = vector.load %arg1[%c0, %c0_0, %c0_1] : memref<1x16x1xi32, #tpu.memory_space<vmem>>, vector<1x16x1xi32>
    %1 = tpu.iota {dimensions = array<i32: 2>} : vector<1x16x24xi32>
    %2 = vector.broadcast %0 : vector<1x16x1xi32> to vector<1x16x24xi32>
    %3 = arith.cmpi eq, %2, %1 : vector<1x16x24xi32>
    %cst = arith.constant 1.000000e+00 : f32
    %cst_2 = arith.constant 0.000000e+00 : f32
    %4 = vector.broadcast %cst : f32 to vector<1x16x24xf32>
    %5 = vector.broadcast %cst_2 : f32 to vector<1x16x24xf32>
    %6 = arith.select %3, %4, %5 : vector<1x16x24xi1>, vector<1x16x24xf32>
    %7 = arith.truncf %6 : vector<1x16x24xf32> to vector<1x16x24xbf16>
    %8 = vector.shape_cast %7 : vector<1x16x24xbf16> to vector<16x24xbf16>
    %c0_3 = arith.constant 0 : index
    %c0_4 = arith.constant 0 : index
    %9 = vector.load %arg2[%c0_3, %c0_4] : memref<24x32xbf16, #tpu.memory_space<vmem>>, vector<24x32xbf16>
    %cst_5 = arith.constant dense<0.000000e+00> : vector<16x32xf32>
    %10 = tpu.matmul %8, %9, %cst_5 {dimension_numbers = #tpu.dot_dimension_numbers<[1], [0], [0], [1], [0, 0, 1, 1], [], []>} : vector<16x24xbf16>, vector<24x32xbf16>, vector<16x32xf32> -> vector<16x32xf32>
    %11 = vector.shape_cast %10 : vector<16x32xf32> to vector<1x16x32xf32>
    %cst_6 = arith.constant 0.000000e+00 : f32
    %12 = vector.broadcast %cst_6 : f32 to vector<1x1x32xf32>
    %13 = tpu.concatenate %12, %11, %12 in 1 : vector<1x1x32xf32>, vector<1x16x32xf32>, vector<1x1x32xf32> -> vector<1x18x32xf32>
    %14 = vector.extract_strided_slice %13 {offsets = [0, 0, 0], sizes = [1, 16, 32], strides = [1, 1, 1]} : vector<1x18x32xf32> to vector<1x16x32xf32>
    %15 = vector.extract_strided_slice %13 {offsets = [0, 1, 0], sizes = [1, 16, 32], strides = [1, 1, 1]} : vector<1x18x32xf32> to vector<1x16x32xf32>
    %16 = vector.extract_strided_slice %13 {offsets = [0, 2, 0], sizes = [1, 16, 32], strides = [1, 1, 1]} : vector<1x18x32xf32> to vector<1x16x32xf32>
    %17 = tpu.concatenate %14, %15, %16 in 2 : vector<1x16x32xf32>, vector<1x16x32xf32>, vector<1x16x32xf32> -> vector<1x16x96xf32>
    %18 = arith.truncf %17 : vector<1x16x96xf32> to vector<1x16x96xbf16>
    %19 = vector.shape_cast %18 : vector<1x16x96xbf16> to vector<16x96xbf16>
    %c0_7 = arith.constant 0 : index
    %c0_8 = arith.constant 0 : index
    %c0_9 = arith.constant 0 : index
    %20 = vector.load %arg3[%c0_7, %c0_8, %c0_9] : memref<2x96x64xbf16, #tpu.memory_space<vmem>>, vector<1x96x64xbf16>
    %21 = vector.shape_cast %20 : vector<1x96x64xbf16> to vector<96x64xbf16>
    %cst_10 = arith.constant dense<0.000000e+00> : vector<16x64xf32>
    %22 = tpu.matmul %19, %21, %cst_10 {dimension_numbers = #tpu.dot_dimension_numbers<[1], [0], [0], [1], [0, 0, 1, 1], [], []>} : vector<16x96xbf16>, vector<96x64xbf16>, vector<16x64xf32> -> vector<16x64xf32>
    %c0_11 = arith.constant 0 : index
    %c0_12 = arith.constant 0 : index
    %c0_13 = arith.constant 0 : index
    %23 = vector.load %arg4[%c0_11, %c0_12, %c0_13] : memref<2x1x64xf32, #tpu.memory_space<vmem>>, vector<1x1x64xf32>
    %24 = vector.shape_cast %23 : vector<1x1x64xf32> to vector<1x64xf32>
    %25 = vector.broadcast %24 : vector<1x64xf32> to vector<16x64xf32>
    %26 = arith.addf %22, %25 : vector<16x64xf32>
    %27 = vector.extract_strided_slice %26 {offsets = [0, 0], sizes = [16, 32], strides = [1, 1]} : vector<16x64xf32> to vector<16x32xf32>
    %28 = vector.extract_strided_slice %26 {offsets = [0, 32], sizes = [16, 32], strides = [1, 1]} : vector<16x64xf32> to vector<16x32xf32>
    %29 = arith.negf %28 : vector<16x32xf32>
    %30 = math.exp %29 : vector<16x32xf32>
    %cst_14 = arith.constant 1.000000e+00 : f32
    %31 = vector.broadcast %cst_14 : f32 to vector<16x32xf32>
    %32 = arith.addf %31, %30 : vector<16x32xf32>
    %33 = arith.divf %31, %32 : vector<16x32xf32>
    %34 = arith.mulf %27, %33 : vector<16x32xf32>
    %35 = arith.addf %34, %10 : vector<16x32xf32>
    %cst_15 = arith.constant 0.707106769 : f32
    %36 = vector.broadcast %cst_15 : f32 to vector<16x32xf32>
    %37 = arith.mulf %35, %36 : vector<16x32xf32>
    %38 = vector.shape_cast %37 : vector<16x32xf32> to vector<1x16x32xf32>
    %cst_16 = arith.constant 0.000000e+00 : f32
    %39 = vector.broadcast %cst_16 : f32 to vector<1x1x32xf32>
    %40 = tpu.concatenate %39, %38, %39 in 1 : vector<1x1x32xf32>, vector<1x16x32xf32>, vector<1x1x32xf32> -> vector<1x18x32xf32>
    %41 = vector.extract_strided_slice %40 {offsets = [0, 0, 0], sizes = [1, 16, 32], strides = [1, 1, 1]} : vector<1x18x32xf32> to vector<1x16x32xf32>
    %42 = vector.extract_strided_slice %40 {offsets = [0, 1, 0], sizes = [1, 16, 32], strides = [1, 1, 1]} : vector<1x18x32xf32> to vector<1x16x32xf32>
    %43 = vector.extract_strided_slice %40 {offsets = [0, 2, 0], sizes = [1, 16, 32], strides = [1, 1, 1]} : vector<1x18x32xf32> to vector<1x16x32xf32>
    %44 = tpu.concatenate %41, %42, %43 in 2 : vector<1x16x32xf32>, vector<1x16x32xf32>, vector<1x16x32xf32> -> vector<1x16x96xf32>
    %45 = arith.truncf %44 : vector<1x16x96xf32> to vector<1x16x96xbf16>
    %46 = vector.shape_cast %45 : vector<1x16x96xbf16> to vector<16x96xbf16>
    %c1 = arith.constant 1 : index
    %c0_17 = arith.constant 0 : index
    %c0_18 = arith.constant 0 : index
    %47 = vector.load %arg3[%c1, %c0_17, %c0_18] : memref<2x96x64xbf16, #tpu.memory_space<vmem>>, vector<1x96x64xbf16>
    %48 = vector.shape_cast %47 : vector<1x96x64xbf16> to vector<96x64xbf16>
    %cst_19 = arith.constant dense<0.000000e+00> : vector<16x64xf32>
    %49 = tpu.matmul %46, %48, %cst_19 {dimension_numbers = #tpu.dot_dimension_numbers<[1], [0], [0], [1], [0, 0, 1, 1], [], []>} : vector<16x96xbf16>, vector<96x64xbf16>, vector<16x64xf32> -> vector<16x64xf32>
    %c1_20 = arith.constant 1 : index
    %c0_21 = arith.constant 0 : index
    %c0_22 = arith.constant 0 : index
    %50 = vector.load %arg4[%c1_20, %c0_21, %c0_22] : memref<2x1x64xf32, #tpu.memory_space<vmem>>, vector<1x1x64xf32>
    %51 = vector.shape_cast %50 : vector<1x1x64xf32> to vector<1x64xf32>
    %52 = vector.broadcast %51 : vector<1x64xf32> to vector<16x64xf32>
    %53 = arith.addf %49, %52 : vector<16x64xf32>
    %54 = vector.extract_strided_slice %53 {offsets = [0, 0], sizes = [16, 32], strides = [1, 1]} : vector<16x64xf32> to vector<16x32xf32>
    %55 = vector.extract_strided_slice %53 {offsets = [0, 32], sizes = [16, 32], strides = [1, 1]} : vector<16x64xf32> to vector<16x32xf32>
    %56 = arith.negf %55 : vector<16x32xf32>
    %57 = math.exp %56 : vector<16x32xf32>
    %cst_23 = arith.constant 1.000000e+00 : f32
    %58 = vector.broadcast %cst_23 : f32 to vector<16x32xf32>
    %59 = arith.addf %58, %57 : vector<16x32xf32>
    %60 = arith.divf %58, %59 : vector<16x32xf32>
    %61 = arith.mulf %54, %60 : vector<16x32xf32>
    %62 = arith.addf %61, %37 : vector<16x32xf32>
    %cst_24 = arith.constant 0.707106769 : f32
    %63 = vector.broadcast %cst_24 : f32 to vector<16x32xf32>
    %64 = arith.mulf %62, %63 : vector<16x32xf32>
    %65 = arith.truncf %64 : vector<16x32xf32> to vector<16x32xbf16>
    %c0_25 = arith.constant 0 : index
    %c0_26 = arith.constant 0 : index
    %66 = vector.load %arg5[%c0_25, %c0_26] : memref<32x32xbf16, #tpu.memory_space<vmem>>, vector<32x32xbf16>
    %cst_27 = arith.constant dense<0.000000e+00> : vector<16x32xf32>
    %67 = tpu.matmul %65, %66, %cst_27 {dimension_numbers = #tpu.dot_dimension_numbers<[1], [0], [0], [1], [0, 0, 1, 1], [], []>} : vector<16x32xbf16>, vector<32x32xbf16>, vector<16x32xf32> -> vector<16x32xf32>
    %c0_28 = arith.constant 0 : index
    %c0_29 = arith.constant 0 : index
    %68 = vector.load %arg6[%c0_28, %c0_29] : memref<1x32xf32, #tpu.memory_space<vmem>>, vector<1x32xf32>
    %69 = vector.broadcast %68 : vector<1x32xf32> to vector<16x32xf32>
    %70 = arith.addf %67, %69 : vector<16x32xf32>
    %71 = vector.shape_cast %70 : vector<16x32xf32> to vector<1x16x32xf32>
    %c0_30 = arith.constant 0 : index
    %c0_31 = arith.constant 0 : index
    %c0_32 = arith.constant 0 : index
    %72 = vector.load %arg7[%c0_30, %c0_31, %c0_32] : memref<1x16x32xf32, #tpu.memory_space<vmem>>, vector<1x16x32xf32>
    tpu.vector_store %arg7[%c0_30, %c0_31, %c0_32], %71 {strides = array<i32>} : memref<1x16x32xf32, #tpu.memory_space<vmem>>, vector<1x16x32xf32>,
    return
  }
  func.func @transform_0(%arg0: i32) -> (i32, i32, i32) {
    %c0_i32 = arith.constant 0 : i32
    %c0_i32_0 = arith.constant 0 : i32
    %c0_i32_1 = arith.constant 0 : i32
    return %arg0, %c0_i32, %c0_i32_0 : i32, i32, i32
  }
  func.func @transform_1(%arg0: i32) -> (i32, i32) {
    %c0_i32 = arith.constant 0 : i32
    %c0_i32_0 = arith.constant 0 : i32
    %c0_i32_1 = arith.constant 0 : i32
    return %c0_i32, %c0_i32_0 : i32, i32
  }
  func.func @transform_2(%arg0: i32) -> (i32, i32, i32) {
    %c0_i32 = arith.constant 0 : i32
    %c0_i32_0 = arith.constant 0 : i32
    %c0_i32_1 = arith.constant 0 : i32
    %c0_i32_2 = arith.constant 0 : i32
    return %c0_i32, %c0_i32_0, %c0_i32_1 : i32, i32, i32
  }
  func.func @transform_3(%arg0: i32) -> (i32, i32, i32) {
    %c0_i32 = arith.constant 0 : i32
    %c0_i32_0 = arith.constant 0 : i32
    %c0_i32_1 = arith.constant 0 : i32
    %c0_i32_2 = arith.constant 0 : i32
    return %c0_i32, %c0_i32_0, %c0_i32_1 : i32, i32, i32
  }
  func.func @transform_4(%arg0: i32) -> (i32, i32) {
    %c0_i32 = arith.constant 0 : i32
    %c0_i32_0 = arith.constant 0 : i32
    %c0_i32_1 = arith.constant 0 : i32
    return %c0_i32, %c0_i32_0 : i32, i32
  }
  func.func @transform_5(%arg0: i32) -> (i32, i32) {
    %c0_i32 = arith.constant 0 : i32
    %c0_i32_0 = arith.constant 0 : i32
    %c0_i32_1 = arith.constant 0 : i32
    return %c0_i32, %c0_i32_0 : i32, i32
  }
  func.func @transform_6(%arg0: i32) -> (i32, i32, i32) {
    %c0_i32 = arith.constant 0 : i32
    %c0_i32_0 = arith.constant 0 : i32
    %c0_i32_1 = arith.constant 0 : i32
    return %arg0, %c0_i32, %c0_i32_0 : i32, i32, i32
  }
}

</mosaic_0001>

<llo_original>
// kernel: tpu_custom_call.1
$region0: #{tpu_custom_call.1}
  #allocation0 [shape = 'u32[]', space=smem, size = 0x4, offset = 0x4, fixed_abs, tag = 'smem constant byte address 0x4 - core index']
  #allocation1 [shape = 'u32[144,128]{1,0:T(1,128)}', space=vmem, size = 0x12000, scoped, tag = 'internal scratch']
  %s0 = inlined_call_operand.vmem [shape: s32[2,16,1], index: 0, kind: input, shape index: {}]
  %s1 = inlined_call_operand.vmem [shape: bf16[24,32], index: 1, kind: input, shape index: {}]
  %s2 = inlined_call_operand.vmem [shape: bf16[2,96,64], index: 2, kind: input, shape index: {}]
  %s3 = inlined_call_operand.vmem [shape: f32[2,1,64], index: 3, kind: input, shape index: {}]
  %s4 = inlined_call_operand.vmem [shape: bf16[32,32], index: 4, kind: input, shape index: {}]
  %s5 = inlined_call_operand.vmem [shape: f32[1,32], index: 5, kind: input, shape index: {}]
  %s6 = inlined_call_operand.hbm [shape: f32[2,16,32], index: 6, kind: output, shape index: {}]
  %s7 = sld [smem:[#allocation0]]
  $region57: #{tpu_custom_call.1} parent=0
    _
  %s9 = ssub.s32 1, %s7
  %s10 = scalar_select 0, %s9, %s7
  $region1: #{tpu_custom_call.1} parent=0
    #allocation2 [shape = 'u8[16384]{0}', space=vmem, size = 0x4000, scoped, tag = 'output window, operand 0']
    #allocation3 [shape = 's32[2]{0}', space=sflag, size = 0x8, scoped, tag = 'scoped memory for tpu_custom_call.1']
    %11 = vsyncpa [#allocation3], 0
    %s12 = scalar_lea.sflag [#allocation3], 1
    %13 = vsyncpa %s12, 0
    loop: start=0, step=1, limit=4
    $region2: #{tpu_custom_call.1} parent=1 // loop_pre_header
      _
    $region3: #{tpu_custom_call.1} parent=1 // loop_header
      %s15 = sphi 0, %s19
      %p16 = scmp.ge.s32.totalorder %s15, 4
      %s25 = sphi 0, %s27
      %s28 = sphi 0, %s25
      %s29 = sphi 0, %s28
      %s45 = sphi 0, %s29
      %s49 = sphi 0, %s49
      %s51 = sphi 0, %s49
      %s52 = sphi 0, %s51
      %s66 = sphi 0, %s52
      %s70 = sphi 0, %s70
      %s72 = sphi 0, %s70
      %s73 = sphi 0, %s72
      %s87 = sphi 0, %s73
      %s91 = sphi 0, %s91
      %s93 = sphi 0, %s91
      %s94 = sphi 0, %s93
      %s108 = sphi 0, %s94
      %s112 = sphi 0, %s112
      %s114 = sphi 0, %s112
      %s115 = sphi 0, %s114
      %s129 = sphi 0, %s115
      %s133 = sphi 0, %s133
      %s135 = sphi 0, %s133
      %s136 = sphi 0, %s135
      %s150 = sphi 0, %s136
      %s156 = sphi 0, %s158
      %s159 = sphi 0, %s156
      %s160 = sphi 0, %s159
      %s176 = sphi 0, %s160
    $region4: #{tpu_custom_call.1} parent=1 // loop_header_branch
      %18 = sbr.rel (%p16) target = $region8
    $region5: #{tpu_custom_call.1} parent=1 // loop_body
      %s20 = ssub.s32 %s15, 1
      %s21 = ssub.s32 %s15, 2
      %s22 = sadd.s32 %s15, 1
      %s23 = ssub.s32 %s15, %s22
      %p24 = scmp.eq.s32.totalorder %s23, 0
      %s26 = sadd.s32 %s25, 1
      %s27 = scalar_select %p24, %s25, %s26
      %p30 = pneg %p24
      %p31 = scmp.eq.s32.totalorder %s15, 1
      %p32 = por %p30, %p31
      %p33 = scmp.ne.s32.totalorder %s25, %s28
      %p34 = scmp.eq.s32.totalorder %s15, 0
      %p35 = por %p33, %p34
      %p36 = scmp.ne.s32.totalorder %s25, %s28
      %p37 = scmp.eq.s32.totalorder %s20, 1
      %p38 = por %p36, %p37
      %p39 = scmp.ne.s32.totalorder %s28, %s29
      %p40 = scmp.eq.s32.totalorder %s20, 0
      %p41 = por %p39, %p40
      %p42 = scmp.ne.s32.totalorder %s28, %s29
      %p43 = scmp.eq.s32.totalorder %s21, 1
      %p44 = por %p42, %p43
      %p46 = scmp.ne.s32.totalorder %s29, %s45
      %p47 = scmp.eq.s32.totalorder %s21, 0
      %p48 = por %p46, %p47
      %s50 = sadd.s32 %s49, 1
      %p53 = scmp.eq.s32.totalorder %s15, 1
      %p54 = scmp.ne.s32.totalorder %s49, %s51
      %p55 = scmp.eq.s32.totalorder %s15, 0
      %p56 = por %p54, %p55
      %p57 = scmp.ne.s32.totalorder %s49, %s51
      %p58 = scmp.eq.s32.totalorder %s20, 1
      %p59 = por %p57, %p58
      %p60 = scmp.ne.s32.totalorder %s51, %s52
      %p61 = scmp.eq.s32.totalorder %s20, 0
      %p62 = por %p60, %p61
      %p63 = scmp.ne.s32.totalorder %s51, %s52
      %p64 = scmp.eq.s32.totalorder %s21, 1
      %p65 = por %p63, %p64
      %p67 = scmp.ne.s32.totalorder %s52, %s66
      %p68 = scmp.eq.s32.totalorder %s21, 0
      %p69 = por %p67, %p68
      %s71 = sadd.s32 %s70, 1
      %p74 = scmp.eq.s32.totalorder %s15, 1
      %p75 = scmp.ne.s32.totalorder %s70, %s72
      %p76 = scmp.eq.s32.totalorder %s15, 0
      %p77 = por %p75, %p76
      %p78 = scmp.ne.s32.totalorder %s70, %s72
      %p79 = scmp.eq.s32.totalorder %s20, 1
      %p80 = por %p78, %p79
      %p81 = scmp.ne.s32.totalorder %s72, %s73
      %p82 = scmp.eq.s32.totalorder %s20, 0
      %p83 = por %p81, %p82
      %p84 = scmp.ne.s32.totalorder %s72, %s73
      %p85 = scmp.eq.s32.totalorder %s21, 1
      %p86 = por %p84, %p85
      %p88 = scmp.ne.s32.totalorder %s73, %s87
      %p89 = scmp.eq.s32.totalorder %s21, 0
      %p90 = por %p88, %p89
      %s92 = sadd.s32 %s91, 1
      %p95 = scmp.eq.s32.totalorder %s15, 1
      %p96 = scmp.ne.s32.totalorder %s91, %s93
      %p97 = scmp.eq.s32.totalorder %s15, 0
      %p98 = por %p96, %p97
      %p99 = scmp.ne.s32.totalorder %s91, %s93
      %p100 = scmp.eq.s32.totalorder %s20, 1
      %p101 = por %p99, %p100
      %p102 = scmp.ne.s32.totalorder %s93, %s94
      %p103 = scmp.eq.s32.totalorder %s20, 0
      %p104 = por %p102, %p103
      %p105 = scmp.ne.s32.totalorder %s93, %s94
      %p106 = scmp.eq.s32.totalorder %s21, 1
      %p107 = por %p105, %p106
      %p109 = scmp.ne.s32.totalorder %s94, %s108
      %p110 = scmp.eq.s32.totalorder %s21, 0
      %p111 = por %p109, %p110
      %s113 = sadd.s32 %s112, 1
      %p116 = scmp.eq.s32.totalorder %s15, 1
      %p117 = scmp.ne.s32.totalorder %s112, %s114
      %p118 = scmp.eq.s32.totalorder %s15, 0
      %p119 = por %p117, %p118
      %p120 = scmp.ne.s32.totalorder %s112, %s114
      %p121 = scmp.eq.s32.totalorder %s20, 1
      %p122 = por %p120, %p121
      %p123 = scmp.ne.s32.totalorder %s114, %s115
      %p124 = scmp.eq.s32.totalorder %s20, 0
      %p125 = por %p123, %p124
      %p126 = scmp.ne.s32.totalorder %s114, %s115
      %p127 = scmp.eq.s32.totalorder %s21, 1
      %p128 = por %p126, %p127
      %p130 = scmp.ne.s32.totalorder %s115, %s129
      %p131 = scmp.eq.s32.totalorder %s21, 0
      %p132 = por %p130, %p131
      %s134 = sadd.s32 %s133, 1
      %p137 = scmp.eq.s32.totalorder %s15, 1
      %p138 = scmp.ne.s32.totalorder %s133, %s135
      %p139 = scmp.eq.s32.totalorder %s15, 0
      %p140 = por %p138, %p139
      %p141 = scmp.ne.s32.totalorder %s133, %s135
      %p142 = scmp.eq.s32.totalorder %s20, 1
      %p143 = por %p141, %p142
      %p144 = scmp.ne.s32.totalorder %s135, %s136
      %p145 = scmp.eq.s32.totalorder %s20, 0
      %p146 = por %p144, %p145
      %p147 = scmp.ne.s32.totalorder %s135, %s136
      %p148 = scmp.eq.s32.totalorder %s21, 1
      %p149 = por %p147, %p148
      %p151 = scmp.ne.s32.totalorder %s136, %s150
      %p152 = scmp.eq.s32.totalorder %s21, 0
      %p153 = por %p151, %p152
      %s154 = ssub.s32 %s15, %s22
      %p155 = scmp.eq.s32.totalorder %s154, 0
      %s157 = sadd.s32 %s156, 1
      %s158 = scalar_select %p155, %s156, %s157
      %p161 = pneg %p155
      %p162 = scmp.eq.s32.totalorder %s15, 1
      %p163 = por %p161, %p162
      %p164 = scmp.ne.s32.totalorder %s156, %s159
      %p165 = scmp.eq.s32.totalorder %s15, 0
      %p166 = por %p164, %p165
      %p167 = scmp.ne.s32.totalorder %s156, %s159
      %p168 = scmp.eq.s32.totalorder %s20, 1
      %p169 = por %p167, %p168
      %p170 = scmp.ne.s32.totalorder %s159, %s160
      %p171 = scmp.eq.s32.totalorder %s20, 0
      %p172 = por %p170, %p171
      %p173 = scmp.ne.s32.totalorder %s159, %s160
      %p174 = scmp.eq.s32.totalorder %s21, 1
      %p175 = por %p173, %p174
      %p177 = scmp.ne.s32.totalorder %s160, %s176
      %p178 = scmp.eq.s32.totalorder %s21, 0
      %p179 = por %p177, %p178
      %p180 = scmp.le.s32.totalorder 1, %s15
      %p181 = scmp.lt.s32.totalorder %s15, 3
      %p182 = pnand %p180, %p181
      %p183 = pneg %p182
      // Predicated region
      $region9: #{tpu_custom_call.1} parent=5 // pred_check
        _
      $region10: #{tpu_custom_call.1} parent=5 // pred_check_branch
        %185 = sbr.rel (%p182) target = $region12
      $region11: #{tpu_custom_call.1} parent=5 // pred_region
        %s186 = ssub.s32 %s15, 1
        // Predicated region
        $region13: #{tpu_custom_call.1} parent=11 // pred_check
          %p187 = pneg %p62
        $region14: #{tpu_custom_call.1} parent=11 // pred_check_branch
          %189 = sbr.rel (%p187) target = $region16
        $region15: #{tpu_custom_call.1} parent=11 // pred_region
          _
        $region16: #{tpu_custom_call.1} parent=11 // pred_fallthru
          _
        // Predicated region
        $region17: #{tpu_custom_call.1} parent=11 // pred_check
          %p190 = pneg %p83
        $region18: #{tpu_custom_call.1} parent=11 // pred_check_branch
          %192 = sbr.rel (%p190) target = $region20
        $region19: #{tpu_custom_call.1} parent=11 // pred_region
          _
        $region20: #{tpu_custom_call.1} parent=11 // pred_fallthru
          _
        // Predicated region
        $region21: #{tpu_custom_call.1} parent=11 // pred_check
          %p193 = pneg %p104
        $region22: #{tpu_custom_call.1} parent=11 // pred_check_branch
          %195 = sbr.rel (%p193) target = $region24
        $region23: #{tpu_custom_call.1} parent=11 // pred_region
          _
        $region24: #{tpu_custom_call.1} parent=11 // pred_fallthru
          _
        // Predicated region
        $region25: #{tpu_custom_call.1} parent=11 // pred_check
          %p196 = pneg %p125
        $region26: #{tpu_custom_call.1} parent=11 // pred_check_branch
          %198 = sbr.rel (%p196) target = $region28
        $region27: #{tpu_custom_call.1} parent=11 // pred_region
          _
        $region28: #{tpu_custom_call.1} parent=11 // pred_fallthru
          _
        // Predicated region
        $region29: #{tpu_custom_call.1} parent=11 // pred_check
          %p199 = pneg %p146
        $region30: #{tpu_custom_call.1} parent=11 // pred_check_branch
          %201 = sbr.rel (%p199) target = $region32
        $region31: #{tpu_custom_call.1} parent=11 // pred_region
          _
        $region32: #{tpu_custom_call.1} parent=11 // pred_fallthru
          _
      $region12: #{tpu_custom_call.1} parent=5 // pred_fallthru
        _
      %p202 = scmp.lt.s32.totalorder %s15, 2
      // Predicated region
      $region33: #{tpu_custom_call.1} parent=5 // pred_check
        %p203 = pneg %p202
      $region34: #{tpu_custom_call.1} parent=5 // pred_check_branch
        %205 = sbr.rel (%p203) target = $region36
      $region35: #{tpu_custom_call.1} parent=5 // pred_region
        // Predicated region
        $region37: #{tpu_custom_call.1} parent=35 // pred_check
          %p206 = pneg %p35
        $region38: #{tpu_custom_call.1} parent=35 // pred_check_branch
          %208 = sbr.rel (%p206) target = $region40
        $region39: #{tpu_custom_call.1} parent=35 // pred_region
          %p209 = scmp.lt.s32.totalorder %s15, 1
          %s210 = scalar_select %p209, %s15, 1
          %s211 = smul.addr %s210, 2
          %s212 = smul.addr %s211, 8
          %s213 = scalar_lea.vmem %s0, %s212
        $region40: #{tpu_custom_call.1} parent=35 // pred_fallthru
          _
      $region36: #{tpu_custom_call.1} parent=5 // pred_fallthru
        _
      %p214 = scmp.le.s32.totalorder 1, %s15
      %p215 = scmp.lt.s32.totalorder %s15, 3
      %p216 = pnand %p214, %p215
      %p217 = pneg %p216
      // Predicated region
      $region41: #{tpu_custom_call.1} parent=5 // pred_check
        _
      $region42: #{tpu_custom_call.1} parent=5 // pred_check_branch
        %219 = sbr.rel (%p216) target = $region44
      $region43: #{tpu_custom_call.1} parent=5 // pred_region
        %s220 = ssub.s32 %s15, 1
        %p221 = scmp.lt.s32.totalorder %s20, 1
        %s222 = scalar_select %p221, %s20, 1
        %s223 = smul.addr %s222, 2
        %s224 = smul.addr %s223, 8
        %s225 = scalar_lea.vmem %s0, %s224
        %p226 = pneg %p41
        %p227 = pneg %p38
        %p228 = pneg %p62
        %p229 = pneg %p59
        %p230 = pneg %p83
        %p231 = pneg %p80
        %p232 = pneg %p104
        %p233 = pneg %p101
        %p234 = pneg %p125
        %p235 = pneg %p122
        %p236 = pneg %p146
        %p237 = pneg %p143
        %p238 = pneg %p172
        %p239 = pneg %p169
        %s240 = sand.u32 %s159, 1
        %s241 = scalar_lea.sflag [#allocation3], %s240
        %s242 = sand.u32 %s159, 1
        %s243 = smul.addr %s242, 16
        %s244 = scalar_lea.vmem [#allocation2], %s243
        %p245 = scmp.lt.s32.totalorder %s20, 1
        %s246 = scalar_select %p245, %s20, 1
        %s247 = smul.addr %s246, 2
        %s248 = smul.addr %s247, 8
        %s249 = scalar_lea.vmem %s0, %s248
        %v251 = vld [vmem:[%s249] sm:$0xff]
        %v252 = vld [vmem:[%s249 + $0x8] sm:$0xff]
        %v253 = vlaneseq
        %v254 = vand.u32 %v253, 127
        %255 = vset.pattern.permute.xlu0 0
        %256 = vperm.xlu0 %255, %v251
        %v257 = vpop.permute.xlu0 %256
        %258 = vset.pattern.permute.xlu0 0
        %259 = vperm.xlu0 %258, %v252
        %v260 = vpop.permute.xlu0 %259
        %vm261 = vcmp.eq.s32.totalorder %v257, %v254
        %vm262 = vcmp.eq.s32.totalorder %v260, %v254
        %v263 = vsel %vm261, 1.0, 0.0
        %v264 = vsel %vm262, 1.0, 0.0
        %v265 = vpack.c.bf16 %v264, %v263
        %v266 = vld [vmem:[%s1] sm:$0xf]
        %v267 = vld [vmem:[%s1 + $0x4] sm:$0xf]
        %v268 = vld [vmem:[%s1 + $0x8] sm:$0xf]
        %v272 = vunpack.c.l.b16 %v266
        %v273 = vunpack.c.l.b16 %v267
        %v274 = vunpack.c.l.b16 %v268
        %v275 = vpack.c.b16 %v273, %v272
        %v276 = vpack.c.b16 %v274, %v274
        %vm278 = vcmask 195584
        %v280 = vsel %vm278, %v265, 0
        %vm282 = vcmask 1043456
        %v284 = vsel %vm282, %v276, 0
        %286 = vmatprep.subr.bf16.mxu0 0
        %287 = vmatpush1.bf16.msra.mxu0 0
        %288 = vmatprep.subr.bf16.mxu0 0
        %289 = vmatpush1.bf16.msra.mxu0 0
        %290 = vmatprep.subr.bf16.mxu0 0
        %291 = vmatpush1.bf16.msra.mxu0 0
        %292 = vmatprep.subr.bf16.mxu0 0
        %293 = vmatpush1.bf16.msra.mxu0 0
        %294 = vmatprep.subr.bf16.mxu0 0
        %295 = vmatpush1.bf16.msra.mxu0 0
        %296 = vmatprep.subr.bf16.mxu0 0
        %297 = vmatpush1.bf16.msra.mxu0 0
        %298 = vmatprep.subr.bf16.mxu0 0
        %299 = vmatpush1.bf16.msra.mxu0 %v284
        %300 = vmatprep.subr.bf16.mxu0 0
        %301 = vmatpush1.bf16.msra.mxu0 %v275
        %302 = vmatprep.subr.bf16.mxu0 0
        %303 = vmatpush2.bf16.msra.mxu0 0
        %304 = vmatprep.subr.bf16.mxu0 0
        %305 = vmatpush2.bf16.msra.mxu0 0
        %306 = vmatprep.subr.bf16.mxu0 0
        %307 = vmatpush2.bf16.msra.mxu0 0
        %308 = vmatprep.subr.bf16.mxu0 0
        %309 = vmatpush2.bf16.msra.mxu0 0
        %310 = vmatprep.subr.bf16.mxu0 0
        %311 = vmatpush2.bf16.msra.mxu0 0
        %312 = vmatprep.subr.bf16.mxu0 0
        %313 = vmatpush2.bf16.msra.mxu0 0
        %314 = vmatprep.subr.bf16.mxu0 0
        %315 = vmatpush2.bf16.msra.mxu0 0
        %316 = vmatprep.subr.bf16.mxu0 0
        %317 = vmatpush2.bf16.msra.mxu0 0
        %318 = vmatprep.mubr.bf16.mxu0 0
        %319 = vmatmul.mubr.bf16.gmra.mxu0 %v280
        %v320 = vpop.f32.mrf.mxu0
        %v321 = vadd.f32 0.0, %v320
        %v322 = vpop.f32.mrf.mxu0
        %v323 = vpop.f32.mrf.mxu0
        %v324 = vadd.f32 0.0, %v323
        %v325 = vpop.f32.mrf.mxu0
        %326 = vdwg.mxu0
        %vm329 = vcmask 1040384
        %v330 = vrot.slane %v321, 7
        %v331 = vrot.slane %v324, 7
        %v332 = vsel %vm329, %v330, %v331
        %v336 = vsel %vm329, 0.0, %v330
        %v337 = vsel %vm329, %v331, 0.0
        %vm340 = vcmask 1046528
        %v341 = vrot.slane %v336, 1
        %v342 = vrot.slane %v332, 1
        %v343 = vsel %vm340, %v341, %v342
        %v344 = vrot.slane %v337, 1
        %v345 = vsel %vm340, %v342, %v344
        %346 = vrot.lane.b32.xlu0 %v343, 32
        %v347 = vpop.permute.xlu0 %346
        %348 = vrot.lane.b32.xlu0 %v345, 32
        %v349 = vpop.permute.xlu0 %348
        %vm352 = vcmask 1045504
        %v353 = vrot.slane %v336, 2
        %v354 = vrot.slane %v332, 2
        %v355 = vsel %vm352, %v353, %v354
        %v356 = vrot.slane %v337, 2
        %v357 = vsel %vm352, %v354, %v356
        %358 = vrot.lane.b32.xlu0 %v355, 64
        %v359 = vpop.permute.xlu0 %358
        %360 = vrot.lane.b32.xlu0 %v357, 64
        %v361 = vpop.permute.xlu0 %360
        %vm364 = vcmask 261120
        %v365 = vsel %vm364, %v336, %v347
        %v366 = vsel %vm364, %v332, %v349
        %vm367 = vcmask 523264
        %v368 = vsel %vm367, %v365, %v359
        %v369 = vsel %vm367, %v366, %v361
        %v370 = vpack.c.bf16 %v369, %v368
        %v371 = vld [vmem:[%s2] sm:$0xf]
        %v372 = vld [vmem:[%s2 + $0x4] sm:$0xf]
        %v373 = vld [vmem:[%s2 + $0x8] sm:$0xf]
        %v374 = vld [vmem:[%s2 + $0xc] sm:$0xf]
        %v375 = vld [vmem:[%s2 + $0x10] sm:$0xf]
        %v376 = vld [vmem:[%s2 + $0x14] sm:$0xf]
        %v377 = vld [vmem:[%s2 + $0x18] sm:$0xf]
        %v378 = vld [vmem:[%s2 + $0x1c] sm:$0xf]
        %v379 = vld [vmem:[%s2 + $0x20] sm:$0xf]
        %v380 = vld [vmem:[%s2 + $0x24] sm:$0xf]
        %v381 = vld [vmem:[%s2 + $0x28] sm:$0xf]
        %v382 = vld [vmem:[%s2 + $0x2c] sm:$0xf]
        %v383 = vld [vmem:[%s3] sm:$0x1]
        %v385 = vlaneseq
        %v386 = vshrl.u32 %v385, 7
        %v387 = vsub.s32 0, %v386
        %v388 = vrot.slane %v383, %v387
        %v402 = vunpack.c.l.b16 %v371
        %v403 = vunpack.c.l.b16 %v372
        %v404 = vunpack.c.l.b16 %v373
        %v405 = vunpack.c.l.b16 %v374
        %v406 = vunpack.c.l.b16 %v375
        %v407 = vunpack.c.l.b16 %v376
        %v408 = vunpack.c.l.b16 %v377
        %v409 = vunpack.c.l.b16 %v378
        %v410 = vunpack.c.l.b16 %v379
        %v411 = vunpack.c.l.b16 %v380
        %v412 = vunpack.c.l.b16 %v381
        %v413 = vunpack.c.l.b16 %v382
        %v414 = vpack.c.b16 %v403, %v402
        %v415 = vpack.c.b16 %v405, %v404
        %v416 = vpack.c.b16 %v407, %v406
        %v417 = vpack.c.b16 %v409, %v408
        %v418 = vpack.c.b16 %v411, %v410
        %v419 = vpack.c.b16 %v413, %v412
        %vm426 = vcmask 785408
        %v428 = vsel %vm426, %v370, 0
        %430 = vmatprep.subr.bf16.mxu0 0
        %431 = vmatpush1.bf16.msra.mxu0 0
        %432 = vmatprep.subr.bf16.mxu0 0
        %433 = vmatpush1.bf16.msra.mxu0 0
        %434 = vmatprep.subr.bf16.mxu0 0
        %435 = vmatpush1.bf16.msra.mxu0 %v419
        %436 = vmatprep.subr.bf16.mxu0 0
        %437 = vmatpush1.bf16.msra.mxu0 %v418
        %438 = vmatprep.subr.bf16.mxu0 0
        %439 = vmatpush1.bf16.msra.mxu0 %v417
        %440 = vmatprep.subr.bf16.mxu0 0
        %441 = vmatpush1.bf16.msra.mxu0 %v416
        %442 = vmatprep.subr.bf16.mxu0 0
        %443 = vmatpush1.bf16.msra.mxu0 %v415
        %444 = vmatprep.subr.bf16.mxu0 0
        %445 = vmatpush1.bf16.msra.mxu0 %v414
        %446 = vmatprep.subr.bf16.mxu0 0
        %447 = vmatpush2.bf16.msra.mxu0 0
        %448 = vmatprep.subr.bf16.mxu0 0
        %449 = vmatpush2.bf16.msra.mxu0 0
        %450 = vmatprep.subr.bf16.mxu0 0
        %451 = vmatpush2.bf16.msra.mxu0 0
        %452 = vmatprep.subr.bf16.mxu0 0
        %453 = vmatpush2.bf16.msra.mxu0 0
        %454 = vmatprep.subr.bf16.mxu0 0
        %455 = vmatpush2.bf16.msra.mxu0 0
        %456 = vmatprep.subr.bf16.mxu0 0
        %457 = vmatpush2.bf16.msra.mxu0 0
        %458 = vmatprep.subr.bf16.mxu0 0
        %459 = vmatpush2.bf16.msra.mxu0 0
        %460 = vmatprep.subr.bf16.mxu0 0
        %461 = vmatpush2.bf16.msra.mxu0 0
        %462 = vmatprep.mubr.bf16.mxu0 0
        %463 = vmatmul.mubr.bf16.gmra.mxu0 %v428
        %v464 = vpop.f32.mrf.mxu0
        %v465 = vadd.f32 %v388, %v464
        %v466 = vpop.f32.mrf.mxu0
        %v467 = vpop.f32.mrf.mxu0
        %v468 = vadd.f32 %v388, %v467
        %v469 = vpop.f32.mrf.mxu0
        %470 = vdwg.mxu0
        %v471 = vxor.u32 %v465, 2147483648
        %v472 = vxor.u32 %v468, 2147483648
        %v473 = vmul.f32 %v471, 1.442695
        %v474 = vpow.pop %v473
        %v475 = vmul.f32 %v472, 1.442695
        %v476 = vpow.pop %v475
        %v477 = vadd.f32 %v474, 1.0
        %v478 = vadd.f32 %v476, 1.0
        %v479 = vrcp.pop %v477
        %v480 = vmul.f32 1.0, %v479
        %v481 = vrcp.pop %v478
        %v482 = vmul.f32 1.0, %v481
        %485 = vrot.lane.b32.xlu0 %v480, 96
        %v486 = vpop.permute.xlu0 %485
        %487 = vrot.lane.b32.xlu0 %v482, 96
        %v488 = vpop.permute.xlu0 %487
        %v491 = vmul.f32 %v465, %v486
        %v492 = vmul.f32 %v468, %v488
        %v493 = vadd.f32 %v491, %v321
        %v494 = vadd.f32 %v492, %v324
        %v495 = vmul.f32 %v493, 0.70710677
        %v496 = vmul.f32 %v494, 0.70710677
        %v499 = vrot.slane %v495, 7
        %v500 = vrot.slane %v496, 7
        %v501 = vsel %vm329, %v499, %v500
        %v505 = vsel %vm329, 0.0, %v499
        %v506 = vsel %vm329, %v500, 0.0
        %v509 = vrot.slane %v505, 1
        %v510 = vrot.slane %v501, 1
        %v511 = vsel %vm340, %v509, %v510
        %v512 = vrot.slane %v506, 1
        %v513 = vsel %vm340, %v510, %v512
        %514 = vrot.lane.b32.xlu0 %v511, 32
        %v515 = vpop.permute.xlu0 %514
        %516 = vrot.lane.b32.xlu0 %v513, 32
        %v517 = vpop.permute.xlu0 %516
        %v520 = vrot.slane %v505, 2
        %v521 = vrot.slane %v501, 2
        %v522 = vsel %vm352, %v520, %v521
        %v523 = vrot.slane %v506, 2
        %v524 = vsel %vm352, %v521, %v523
        %525 = vrot.lane.b32.xlu0 %v522, 64
        %v526 = vpop.permute.xlu0 %525
        %527 = vrot.lane.b32.xlu0 %v524, 64
        %v528 = vpop.permute.xlu0 %527
        %v531 = vsel %vm364, %v505, %v515
        %v532 = vsel %vm364, %v501, %v517
        %v533 = vsel %vm367, %v531, %v526
        %v534 = vsel %vm367, %v532, %v528
        %v535 = vpack.c.bf16 %v534, %v533
        %s536 = scalar_lea.vmem %s2, 48
        %v537 = vld [vmem:[%s536] sm:$0xf]
        %v538 = vld [vmem:[%s536 + $0x4] sm:$0xf]
        %v539 = vld [vmem:[%s536 + $0x8] sm:$0xf]
        %v540 = vld [vmem:[%s536 + $0xc] sm:$0xf]
        %v541 = vld [vmem:[%s536 + $0x10] sm:$0xf]
        %v542 = vld [vmem:[%s536 + $0x14] sm:$0xf]
        %v543 = vld [vmem:[%s536 + $0x18] sm:$0xf]
        %v544 = vld [vmem:[%s536 + $0x1c] sm:$0xf]
        %v545 = vld [vmem:[%s536 + $0x20] sm:$0xf]
        %v546 = vld [vmem:[%s536 + $0x24] sm:$0xf]
        %v547 = vld [vmem:[%s536 + $0x28] sm:$0xf]
        %v548 = vld [vmem:[%s536 + $0x2c] sm:$0xf]
        %s549 = scalar_lea.vmem %s3, 1
        %v550 = vld [vmem:[%s549] sm:$0x1]
        %v552 = vlaneseq
        %v553 = vshrl.u32 %v552, 7
        %v554 = vsub.s32 0, %v553
        %v555 = vrot.slane %v550, %v554
        %v569 = vunpack.c.l.b16 %v537
        %v570 = vunpack.c.l.b16 %v538
        %v571 = vunpack.c.l.b16 %v539
        %v572 = vunpack.c.l.b16 %v540
        %v573 = vunpack.c.l.b16 %v541
        %v574 = vunpack.c.l.b16 %v542
        %v575 = vunpack.c.l.b16 %v543
        %v576 = vunpack.c.l.b16 %v544
        %v577 = vunpack.c.l.b16 %v545
        %v578 = vunpack.c.l.b16 %v546
        %v579 = vunpack.c.l.b16 %v547
        %v580 = vunpack.c.l.b16 %v548
        %v581 = vpack.c.b16 %v570, %v569
        %v582 = vpack.c.b16 %v572, %v571
        %v583 = vpack.c.b16 %v574, %v573
        %v584 = vpack.c.b16 %v576, %v575
        %v585 = vpack.c.b16 %v578, %v577
        %v586 = vpack.c.b16 %v580, %v579
        %v594 = vsel %vm426, %v535, 0
        %596 = vmatprep.subr.bf16.mxu0 0
        %597 = vmatpush1.bf16.msra.mxu0 0
        %598 = vmatprep.subr.bf16.mxu0 0
        %599 = vmatpush1.bf16.msra.mxu0 0
        %600 = vmatprep.subr.bf16.mxu0 0
        %601 = vmatpush1.bf16.msra.mxu0 %v586
        %602 = vmatprep.subr.bf16.mxu0 0
        %603 = vmatpush1.bf16.msra.mxu0 %v585
        %604 = vmatprep.subr.bf16.mxu0 0
        %605 = vmatpush1.bf16.msra.mxu0 %v584
        %606 = vmatprep.subr.bf16.mxu0 0
        %607 = vmatpush1.bf16.msra.mxu0 %v583
        %608 = vmatprep.subr.bf16.mxu0 0
        %609 = vmatpush1.bf16.msra.mxu0 %v582
        %610 = vmatprep.subr.bf16.mxu0 0
        %611 = vmatpush1.bf16.msra.mxu0 %v581
        %612 = vmatprep.subr.bf16.mxu0 0
        %613 = vmatpush2.bf16.msra.mxu0 0
        %614 = vmatprep.subr.bf16.mxu0 0
        %615 = vmatpush2.bf16.msra.mxu0 0
        %616 = vmatprep.subr.bf16.mxu0 0
        %617 = vmatpush2.bf16.msra.mxu0 0
        %618 = vmatprep.subr.bf16.mxu0 0
        %619 = vmatpush2.bf16.msra.mxu0 0
        %620 = vmatprep.subr.bf16.mxu0 0
        %621 = vmatpush2.bf16.msra.mxu0 0
        %622 = vmatprep.subr.bf16.mxu0 0
        %623 = vmatpush2.bf16.msra.mxu0 0
        %624 = vmatprep.subr.bf16.mxu0 0
        %625 = vmatpush2.bf16.msra.mxu0 0
        %626 = vmatprep.subr.bf16.mxu0 0
        %627 = vmatpush2.bf16.msra.mxu0 0
        %628 = vmatprep.mubr.bf16.mxu0 0
        %629 = vmatmul.mubr.bf16.gmra.mxu0 %v594
        %v630 = vpop.f32.mrf.mxu0
        %v631 = vadd.f32 %v555, %v630
        %v632 = vpop.f32.mrf.mxu0
        %v633 = vpop.f32.mrf.mxu0
        %v634 = vadd.f32 %v555, %v633
        %v635 = vpop.f32.mrf.mxu0
        %636 = vdwg.mxu0
        %v637 = vxor.u32 %v631, 2147483648
        %v638 = vxor.u32 %v634, 2147483648
        %v639 = vmul.f32 %v637, 1.442695
        %v640 = vpow.pop %v639
        %v641 = vmul.f32 %v638, 1.442695
        %v642 = vpow.pop %v641
        %v643 = vadd.f32 %v640, 1.0
        %v644 = vadd.f32 %v642, 1.0
        %v645 = vrcp.pop %v643
        %v646 = vmul.f32 1.0, %v645
        %v647 = vrcp.pop %v644
        %v648 = vmul.f32 1.0, %v647
        %651 = vrot.lane.b32.xlu0 %v646, 96
        %v652 = vpop.permute.xlu0 %651
        %653 = vrot.lane.b32.xlu0 %v648, 96
        %v654 = vpop.permute.xlu0 %653
        %v657 = vmul.f32 %v631, %v652
        %v658 = vmul.f32 %v634, %v654
        %v659 = vadd.f32 %v657, %v495
        %v660 = vadd.f32 %v658, %v496
        %v661 = vmul.f32 %v659, 0.70710677
        %v662 = vmul.f32 %v660, 0.70710677
        %v663 = vpack.c.bf16 %v662, %v661
        %v664 = vld [vmem:[%s4] sm:$0xf]
        %v665 = vld [vmem:[%s4 + $0x4] sm:$0xf]
        %v666 = vld [vmem:[%s4 + $0x8] sm:$0xf]
        %v667 = vld [vmem:[%s4 + $0xc] sm:$0xf]
        %v668 = vld [vmem:[%s5] sm:$0x1]
        %v670 = vlaneseq
        %v671 = vshrl.u32 %v670, 7
        %v672 = vsub.s32 0, %v671
        %v673 = vrot.slane %v668, %v672
        %v679 = vunpack.c.l.b16 %v664
        %v680 = vunpack.c.l.b16 %v665
        %v681 = vunpack.c.l.b16 %v666
        %v682 = vunpack.c.l.b16 %v667
        %v683 = vpack.c.b16 %v680, %v679
        %v684 = vpack.c.b16 %v682, %v681
        %v688 = vsel %vm364, %v663, 0
        %690 = vmatprep.subr.bf16.mxu0 0
        %691 = vmatpush1.bf16.msra.mxu0 0
        %692 = vmatprep.subr.bf16.mxu0 0
        %693 = vmatpush1.bf16.msra.mxu0 0
        %694 = vmatprep.subr.bf16.mxu0 0
        %695 = vmatpush1.bf16.msra.mxu0 0
        %696 = vmatprep.subr.bf16.mxu0 0
        %697 = vmatpush1.bf16.msra.mxu0 0
        %698 = vmatprep.subr.bf16.mxu0 0
        %699 = vmatpush1.bf16.msra.mxu0 0
        %700 = vmatprep.subr.bf16.mxu0 0
        %701 = vmatpush1.bf16.msra.mxu0 0
        %702 = vmatprep.subr.bf16.mxu0 0
        %703 = vmatpush1.bf16.msra.mxu0 %v684
        %704 = vmatprep.subr.bf16.mxu0 0
        %705 = vmatpush1.bf16.msra.mxu0 %v683
        %706 = vmatprep.subr.bf16.mxu0 0
        %707 = vmatpush2.bf16.msra.mxu0 0
        %708 = vmatprep.subr.bf16.mxu0 0
        %709 = vmatpush2.bf16.msra.mxu0 0
        %710 = vmatprep.subr.bf16.mxu0 0
        %711 = vmatpush2.bf16.msra.mxu0 0
        %712 = vmatprep.subr.bf16.mxu0 0
        %713 = vmatpush2.bf16.msra.mxu0 0
        %714 = vmatprep.subr.bf16.mxu0 0
        %715 = vmatpush2.bf16.msra.mxu0 0
        %716 = vmatprep.subr.bf16.mxu0 0
        %717 = vmatpush2.bf16.msra.mxu0 0
        %718 = vmatprep.subr.bf16.mxu0 0
        %719 = vmatpush2.bf16.msra.mxu0 0
        %720 = vmatprep.subr.bf16.mxu0 0
        %721 = vmatpush2.bf16.msra.mxu0 0
        %722 = vmatprep.mubr.bf16.mxu0 0
        %723 = vmatmul.mubr.bf16.gmra.mxu0 %v688
        %v724 = vpop.f32.mrf.mxu0
        %v725 = vadd.f32 %v673, %v724
        %v726 = vpop.f32.mrf.mxu0
        %v727 = vpop.f32.mrf.mxu0
        %v728 = vadd.f32 %v673, %v727
        %v729 = vpop.f32.mrf.mxu0
        %730 = vdwg.mxu0
        %731 = vst.msk [vmem:[%s244] sm:$0xff] %vm364, %v725
        %732 = vst.msk [vmem:[%s244 + $0x8] sm:$0xff] %vm364, %v728
        %s733 = sand.u32 %s159, 1
        %s734 = scalar_lea.sflag [#allocation3], %s733
        %s735 = sand.u32 %s159, 1
        %s736 = smul.addr %s735, 16
        %s737 = scalar_lea.vmem [#allocation2], %s736
        // Predicated region
        $region45: #{tpu_custom_call.1} parent=43 // pred_check
          %p738 = pneg %p169
        $region46: #{tpu_custom_call.1} parent=43 // pred_check_branch
          %740 = sbr.rel (%p738) target = $region48
        $region47: #{tpu_custom_call.1} parent=43 // pred_region
          %s742 = ssub.s32 256, 256
          %743 = vsyncadd %s734, %s742
          %s744 = smul.addr %s20, 2
          %s745 = smul.addr %s744, 128
          %s746 = scalar_lea.hbm %s6, %s745
          %s747 = sshll.u32 %s737, 4
          %s748 = int_to_ptr.vmem [resolvable:$true] %s747
          %753 = dma.vmem_to_hbm [thread:$0]  %s748, 256, %s746, %s734, 128, 128, 8
        $region48: #{tpu_custom_call.1} parent=43 // pred_fallthru
          _
      $region44: #{tpu_custom_call.1} parent=5 // pred_fallthru
        _
      %p754 = scmp.le.s32.totalorder 2, %s15
      // Predicated region
      $region49: #{tpu_custom_call.1} parent=5 // pred_check
        %p755 = pneg %p754
      $region50: #{tpu_custom_call.1} parent=5 // pred_check_branch
        %757 = sbr.rel (%p755) target = $region52
      $region51: #{tpu_custom_call.1} parent=5 // pred_region
        %s758 = ssub.s32 %s15, 2
        // Predicated region
        $region53: #{tpu_custom_call.1} parent=51 // pred_check
          %p759 = pneg %p175
        $region54: #{tpu_custom_call.1} parent=51 // pred_check_branch
          %761 = sbr.rel (%p759) target = $region56
        $region55: #{tpu_custom_call.1} parent=51 // pred_region
          %s762 = sand.u32 %s160, 1
          %s763 = scalar_lea.sflag [#allocation3], %s762
          %s764 = sand.u32 %s160, 1
          %s765 = smul.addr %s764, 16
          %s766 = scalar_lea.vmem [#allocation2], %s765
          %767 = dma.done %s763, 256
        $region56: #{tpu_custom_call.1} parent=51 // pred_fallthru
          _
      $region52: #{tpu_custom_call.1} parent=5 // pred_fallthru
        _
    $region6: #{tpu_custom_call.1} parent=1 // loop_footer
      %s19 = sadd.s32 1, %s15
    $region7: #{tpu_custom_call.1} parent=1 // loop_footer_branch
      %14 = sbr.rel target = $region3
    $region8: #{tpu_custom_call.1} parent=1 // loop_exit
      _
    %768 = vsyncpa [#allocation3], 1
    %s769 = scalar_lea.sflag [#allocation3], 1
    %770 = vsyncpa %s769, 1

// kernel: tpu_custom_call.1
$region0: #{tpu_custom_call.1}
  #allocation0 [shape = 'u32[]', space=smem, size = 0x4, offset = 0x4, fixed_abs, tag = 'smem constant byte address 0x4 - core index']
  #allocation1 [shape = 'u32[144,128]{1,0:T(1,128)}', space=vmem, size = 0x12000, scoped, tag = 'internal scratch']
  %s0 = inlined_call_operand.vmem [shape: s32[2,16,1], index: 0, kind: input, shape index: {}]
  %s1 = inlined_call_operand.vmem [shape: bf16[24,32], index: 1, kind: input, shape index: {}]
  %s2 = inlined_call_operand.vmem [shape: bf16[2,96,64], index: 2, kind: input, shape index: {}]
  %s3 = inlined_call_operand.vmem [shape: f32[2,1,64], index: 3, kind: input, shape index: {}]
  %s4 = inlined_call_operand.vmem [shape: bf16[32,32], index: 4, kind: input, shape index: {}]
  %s5 = inlined_call_operand.vmem [shape: f32[1,32], index: 5, kind: input, shape index: {}]
  %s6 = inlined_call_operand.hbm [shape: f32[2,16,32], index: 6, kind: output, shape index: {}]
  %s7 = sld [smem:[#allocation0]]
  $region57: #{tpu_custom_call.1} parent=0
    _
  %s9 = ssub.s32 1, %s7
  %s10 = scalar_select 0, %s9, %s7
  $region1: #{tpu_custom_call.1} parent=0
    #allocation2 [shape = 'u8[16384]{0}', space=vmem, size = 0x4000, scoped, tag = 'output window, operand 0']
    #allocation3 [shape = 's32[2]{0}', space=sflag, size = 0x8, scoped, tag = 'scoped memory for tpu_custom_call.1']
    %11 = vsyncpa [#allocation3], 0
    %s12 = scalar_lea.sflag [#allocation3], 1
    %13 = vsyncpa %s12, 0
    loop: start=0, step=1, limit=4
    $region2: #{tpu_custom_call.1} parent=1 // loop_pre_header
      _
    $region3: #{tpu_custom_call.1} parent=1 // loop_header
      %s15 = sphi 0, %s19
      %p16 = scmp.ge.s32.totalorder %s15, 4
      %s25 = sphi 0, %s27
      %s28 = sphi 0, %s25
      %s29 = sphi 0, %s28
      %s45 = sphi 0, %s29
      %s49 = sphi 0, %s49
      %s51 = sphi 0, %s49
      %s52 = sphi 0, %s51
      %s66 = sphi 0, %s52
      %s70 = sphi 0, %s70
      %s72 = sphi 0, %s70
      %s73 = sphi 0, %s72
      %s87 = sphi 0, %s73
      %s91 = sphi 0, %s91
      %s93 = sphi 0, %s91
      %s94 = sphi 0, %s93
      %s108 = sphi 0, %s94
      %s112 = sphi 0, %s112
      %s114 = sphi 0, %s112
      %s115 = sphi 0, %s114
      %s129 = sphi 0, %s115
      %s133 = sphi 0, %s133
      %s135 = sphi 0, %s133
      %s136 = sphi 0, %s135
      %s150 = sphi 0, %s136
      %s156 = sphi 0, %s158
      %s159 = sphi 0, %s156
      %s160 = sphi 0, %s159
      %s176 = sphi 0, %s160
    $region4: #{tpu_custom_call.1} parent=1 // loop_header_branch
      %18 = sbr.rel (%p16) target = $region8
    $region5: #{tpu_custom_call.1} parent=1 // loop_body
      %s20 = ssub.s32 %s15, 1
      %s21 = ssub.s32 %s15, 2
      %s22 = sadd.s32 %s15, 1
      %s23 = ssub.s32 %s15, %s22
      %p24 = scmp.eq.s32.totalorder %s23, 0
      %s26 = sadd.s32 %s25, 1
      %s27 = scalar_select %p24, %s25, %s26
      %p30 = pneg %p24
      %p31 = scmp.eq.s32.totalorder %s15, 1
      %p32 = por %p30, %p31
      %p33 = scmp.ne.s32.totalorder %s25, %s28
      %p34 = scmp.eq.s32.totalorder %s15, 0
      %p35 = por %p33, %p34
      %p36 = scmp.ne.s32.totalorder %s25, %s28
      %p37 = scmp.eq.s32.totalorder %s20, 1
      %p38 = por %p36, %p37
      %p39 = scmp.ne.s32.totalorder %s28, %s29
      %p40 = scmp.eq.s32.totalorder %s20, 0
      %p41 = por %p39, %p40
      %p42 = scmp.ne.s32.totalorder %s28, %s29
      %p43 = scmp.eq.s32.totalorder %s21, 1
      %p44 = por %p42, %p43
      %p46 = scmp.ne.s32.totalorder %s29, %s45
      %p47 = scmp.eq.s32.totalorder %s21, 0
      %p48 = por %p46, %p47
      %s50 = sadd.s32 %s49, 1
      %p53 = scmp.eq.s32.totalorder %s15, 1
      %p54 = scmp.ne.s32.totalorder %s49, %s51
      %p55 = scmp.eq.s32.totalorder %s15, 0
      %p56 = por %p54, %p55
      %p57 = scmp.ne.s32.totalorder %s49, %s51
      %p58 = scmp.eq.s32.totalorder %s20, 1
      %p59 = por %p57, %p58
      %p60 = scmp.ne.s32.totalorder %s51, %s52
      %p61 = scmp.eq.s32.totalorder %s20, 0
      %p62 = por %p60, %p61
      %p63 = scmp.ne.s32.totalorder %s51, %s52
      %p64 = scmp.eq.s32.totalorder %s21, 1
      %p65 = por %p63, %p64
      %p67 = scmp.ne.s32.totalorder %s52, %s66
      %p68 = scmp.eq.s32.totalorder %s21, 0
      %p69 = por %p67, %p68
      %s71 = sadd.s32 %s70, 1
      %p74 = scmp.eq.s32.totalorder %s15, 1
      %p75 = scmp.ne.s32.totalorder %s70, %s72
      %p76 = scmp.eq.s32.totalorder %s15, 0
      %p77 = por %p75, %p76
      %p78 = scmp.ne.s32.totalorder %s70, %s72
      %p79 = scmp.eq.s32.totalorder %s20, 1
      %p80 = por %p78, %p79
      %p81 = scmp.ne.s32.totalorder %s72, %s73
      %p82 = scmp.eq.s32.totalorder %s20, 0
      %p83 = por %p81, %p82
      %p84 = scmp.ne.s32.totalorder %s72, %s73
      %p85 = scmp.eq.s32.totalorder %s21, 1
      %p86 = por %p84, %p85
      %p88 = scmp.ne.s32.totalorder %s73, %s87
      %p89 = scmp.eq.s32.totalorder %s21, 0
      %p90 = por %p88, %p89
      %s92 = sadd.s32 %s91, 1
      %p95 = scmp.eq.s32.totalorder %s15, 1
      %p96 = scmp.ne.s32.totalorder %s91, %s93
      %p97 = scmp.eq.s32.totalorder %s15, 0
      %p98 = por %p96, %p97
      %p99 = scmp.ne.s32.totalorder %s91, %s93
      %p100 = scmp.eq.s32.totalorder %s20, 1
      %p101 = por %p99, %p100
      %p102 = scmp.ne.s32.totalorder %s93, %s94
      %p103 = scmp.eq.s32.totalorder %s20, 0
      %p104 = por %p102, %p103
      %p105 = scmp.ne.s32.totalorder %s93, %s94
      %p106 = scmp.eq.s32.totalorder %s21, 1
      %p107 = por %p105, %p106
      %p109 = scmp.ne.s32.totalorder %s94, %s108
      %p110 = scmp.eq.s32.totalorder %s21, 0
      %p111 = por %p109, %p110
      %s113 = sadd.s32 %s112, 1
      %p116 = scmp.eq.s32.totalorder %s15, 1
      %p117 = scmp.ne.s32.totalorder %s112, %s114
      %p118 = scmp.eq.s32.totalorder %s15, 0
      %p119 = por %p117, %p118
      %p120 = scmp.ne.s32.totalorder %s112, %s114
      %p121 = scmp.eq.s32.totalorder %s20, 1
      %p122 = por %p120, %p121
      %p123 = scmp.ne.s32.totalorder %s114, %s115
      %p124 = scmp.eq.s32.totalorder %s20, 0
      %p125 = por %p123, %p124
      %p126 = scmp.ne.s32.totalorder %s114, %s115
      %p127 = scmp.eq.s32.totalorder %s21, 1
      %p128 = por %p126, %p127
      %p130 = scmp.ne.s32.totalorder %s115, %s129
      %p131 = scmp.eq.s32.totalorder %s21, 0
      %p132 = por %p130, %p131
      %s134 = sadd.s32 %s133, 1
      %p137 = scmp.eq.s32.totalorder %s15, 1
      %p138 = scmp.ne.s32.totalorder %s133, %s135
      %p139 = scmp.eq.s32.totalorder %s15, 0
      %p140 = por %p138, %p139
      %p141 = scmp.ne.s32.totalorder %s133, %s135
      %p142 = scmp.eq.s32.totalorder %s20, 1
      %p143 = por %p141, %p142
      %p144 = scmp.ne.s32.totalorder %s135, %s136
      %p145 = scmp.eq.s32.totalorder %s20, 0
      %p146 = por %p144, %p145
      %p147 = scmp.ne.s32.totalorder %s135, %s136
      %p148 = scmp.eq.s32.totalorder %s21, 1
      %p149 = por %p147, %p148
      %p151 = scmp.ne.s32.totalorder %s136, %s150
      %p152 = scmp.eq.s32.totalorder %s21, 0
      %p153 = por %p151, %p152
      %s154 = ssub.s32 %s15, %s22
      %p155 = scmp.eq.s32.totalorder %s154, 0
      %s157 = sadd.s32 %s156, 1
      %s158 = scalar_select %p155, %s156, %s157
      %p161 = pneg %p155
      %p162 = scmp.eq.s32.totalorder %s15, 1
      %p163 = por %p161, %p162
      %p164 = scmp.ne.s32.totalorder %s156, %s159
      %p165 = scmp.eq.s32.totalorder %s15, 0
      %p166 = por %p164, %p165
      %p167 = scmp.ne.s32.totalorder %s156, %s159
      %p168 = scmp.eq.s32.totalorder %s20, 1
      %p169 = por %p167, %p168
      %p170 = scmp.ne.s32.totalorder %s159, %s160
      %p171 = scmp.eq.s32.totalorder %s20, 0
      %p172 = por %p170, %p171
      %p173 = scmp.ne.s32.totalorder %s159, %s160
      %p174 = scmp.eq.s32.totalorder %s21, 1
      %p175 = por %p173, %p174
      %p177 = scmp.ne.s32.totalorder %s160, %s176
      %p178 = scmp.eq.s32.totalorder %s21, 0
      %p179 = por %p177, %p178
      %p180 = scmp.le.s32.totalorder 1, %s15
      %p181 = scmp.lt.s32.totalorder %s15, 3
      %p182 = pnand %p180, %p181
      %p183 = pneg %p182
      // Predicated region
      $region9: #{tpu_custom_call.1} parent=5 // pred_check
        _
      $region10: #{tpu_custom_call.1} parent=5 // pred_check_branch
        %185 = sbr.rel (%p182) target = $region12
      $region11: #{tpu_custom_call.1} parent=5 // pred_region
        %s186 = ssub.s32 %s15, 1
        // Predicated region
        $region13: #{tpu_custom_call.1} parent=11 // pred_check
          %p187 = pneg %p62
        $region14: #{tpu_custom_call.1} parent=11 // pred_check_branch
          %189 = sbr.rel (%p187) target = $region16
        $region15: #{tpu_custom_call.1} parent=11 // pred_region
          _
        $region16: #{tpu_custom_call.1} parent=11 // pred_fallthru
          _
        // Predicated region
        $region17: #{tpu_custom_call.1} parent=11 // pred_check
          %p190 = pneg %p83
        $region18: #{tpu_custom_call.1} parent=11 // pred_check_branch
          %192 = sbr.rel (%p190) target = $region20
        $region19: #{tpu_custom_call.1} parent=11 // pred_region
          _
        $region20: #{tpu_custom_call.1} parent=11 // pred_fallthru
          _
        // Predicated region
        $region21: #{tpu_custom_call.1} parent=11 // pred_check
          %p193 = pneg %p104
        $region22: #{tpu_custom_call.1} parent=11 // pred_check_branch
          %195 = sbr.rel (%p193) target = $region24
        $region23: #{tpu_custom_call.1} parent=11 // pred_region
          _
        $region24: #{tpu_custom_call.1} parent=11 // pred_fallthru
          _
        // Predicated region
        $region25: #{tpu_custom_call.1} parent=11 // pred_check
          %p196 = pneg %p125
        $region26: #{tpu_custom_call.1} parent=11 // pred_check_branch
          %198 = sbr.rel (%p196) target = $region28
        $region27: #{tpu_custom_call.1} parent=11 // pred_region
          _
        $region28: #{tpu_custom_call.1} parent=11 // pred_fallthru
          _
        // Predicated region
        $region29: #{tpu_custom_call.1} parent=11 // pred_check
          %p199 = pneg %p146
        $region30: #{tpu_custom_call.1} parent=11 // pred_check_branch
          %201 = sbr.rel (%p199) target = $region32
        $region31: #{tpu_custom_call.1} parent=11 // pred_region
          _
        $region32: #{tpu_custom_call.1} parent=11 // pred_fallthru
          _
      $region12: #{tpu_custom_call.1} parent=5 // pred_fallthru
        _
      %p202 = scmp.lt.s32.totalorder %s15, 2
      // Predicated region
      $region33: #{tpu_custom_call.1} parent=5 // pred_check
        %p203 = pneg %p202
      $region34: #{tpu_custom_call.1} parent=5 // pred_check_branch
        %205 = sbr.rel (%p203) target = $region36
      $region35: #{tpu_custom_call.1} parent=5 // pred_region
        // Predicated region
        $region37: #{tpu_custom_call.1} parent=35 // pred_check
          %p206 = pneg %p35
        $region38: #{tpu_custom_call.1} parent=35 // pred_check_branch
          %208 = sbr.rel (%p206) target = $region40
        $region39: #{tpu_custom_call.1} parent=35 // pred_region
          %p209 = scmp.lt.s32.totalorder %s15, 1
          %s210 = scalar_select %p209, %s15, 1
          %s211 = smul.addr %s210, 2
          %s212 = smul.addr %s211, 8
          %s213 = scalar_lea.vmem %s0, %s212
        $region40: #{tpu_custom_call.1} parent=35 // pred_fallthru
          _
      $region36: #{tpu_custom_call.1} parent=5 // pred_fallthru
        _
      %p214 = scmp.le.s32.totalorder 1, %s15
      %p215 = scmp.lt.s32.totalorder %s15, 3
      %p216 = pnand %p214, %p215
      %p217 = pneg %p216
      // Predicated region
      $region41: #{tpu_custom_call.1} parent=5 // pred_check
        _
      $region42: #{tpu_custom_call.1} parent=5 // pred_check_branch
        %219 = sbr.rel (%p216) target = $region44
      $region43: #{tpu_custom_call.1} parent=5 // pred_region
        %s220 = ssub.s32 %s15, 1
        %p221 = scmp.lt.s32.totalorder %s20, 1
        %s222 = scalar_select %p221, %s20, 1
        %s223 = smul.addr %s222, 2
        %s224 = smul.addr %s223, 8
        %s225 = scalar_lea.vmem %s0, %s224
        %p226 = pneg %p41
        %p227 = pneg %p38
        %p228 = pneg %p62
        %p229 = pneg %p59
        %p230 = pneg %p83
        %p231 = pneg %p80
        %p232 = pneg %p104
        %p233 = pneg %p101
        %p234 = pneg %p125
        %p235 = pneg %p122
        %p236 = pneg %p146
        %p237 = pneg %p143
        %p238 = pneg %p172
        %p239 = pneg %p169
        %s240 = sand.u32 %s159, 1
        %s241 = scalar_lea.sflag [#allocation3], %s240
        %s242 = sand.u32 %s159, 1
        %s243 = smul.addr %s242, 16
        %s244 = scalar_lea.vmem [#allocation2], %s243
        %p245 = scmp.lt.s32.totalorder %s20, 1
        %s246 = scalar_select %p245, %s20, 1
        %s247 = smul.addr %s246, 2
        %s248 = smul.addr %s247, 8
        %s249 = scalar_lea.vmem %s0, %s248
        %v251 = vld [vmem:[%s249] sm:$0xff]
        %v252 = vld [vmem:[%s249 + $0x8] sm:$0xff]
        %v253 = vlaneseq
        %v254 = vand.u32 %v253, 127
        %255 = vset.pattern.permute.xlu0 0
        %256 = vperm.xlu0 %255, %v251
        %v257 = vpop.permute.xlu0 %256
        %258 = vset.pattern.permute.xlu0 0
        %259 = vperm.xlu0 %258, %v252
        %v260 = vpop.permute.xlu0 %259
        %vm261 = vcmp.eq.s32.totalorder %v257, %v254
        %vm262 = vcmp.eq.s32.totalorder %v260, %v254
        %v263 = vsel %vm261, 1.0, 0.0
        %v264 = vsel %vm262, 1.0, 0.0
        %v265 = vpack.c.bf16 %v264, %v263
        %v266 = vld [vmem:[%s1] sm:$0xf]
        %v267 = vld [vmem:[%s1 + $0x4] sm:$0xf]
        %v268 = vld [vmem:[%s1 + $0x8] sm:$0xf]
        %v272 = vunpack.c.l.b16 %v266
        %v273 = vunpack.c.l.b16 %v267
        %v274 = vunpack.c.l.b16 %v268
        %v275 = vpack.c.b16 %v273, %v272
        %v276 = vpack.c.b16 %v274, %v274
        %vm278 = vcmask 195584
        %v280 = vsel %vm278, %v265, 0
        %vm282 = vcmask 1043456
        %v284 = vsel %vm282, %v276, 0
        %286 = vmatprep.subr.bf16.mxu0 0
        %287 = vmatpush1.bf16.msra.mxu0 0
        %288 = vmatprep.subr.bf16.mxu0 0
        %289 = vmatpush1.bf16.msra.mxu0 0
        %290 = vmatprep.subr.bf16.mxu0 0
        %291 = vmatpush1.bf16.msra.mxu0 0
        %292 = vmatprep.subr.bf16.mxu0 0
        %293 = vmatpush1.bf16.msra.mxu0 0
        %294 = vmatprep.subr.bf16.mxu0 0
        %295 = vmatpush1.bf16.msra.mxu0 0
        %296 = vmatprep.subr.bf16.mxu0 0
        %297 = vmatpush1.bf16.msra.mxu0 0
        %298 = vmatprep.subr.bf16.mxu0 0
        %299 = vmatpush1.bf16.msra.mxu0 %v284
        %300 = vmatprep.subr.bf16.mxu0 0
        %301 = vmatpush1.bf16.msra.mxu0 %v275
        %302 = vmatprep.subr.bf16.mxu0 0
        %303 = vmatpush2.bf16.msra.mxu0 0
        %304 = vmatprep.subr.bf16.mxu0 0
        %305 = vmatpush2.bf16.msra.mxu0 0
        %306 = vmatprep.subr.bf16.mxu0 0
        %307 = vmatpush2.bf16.msra.mxu0 0
        %308 = vmatprep.subr.bf16.mxu0 0
        %309 = vmatpush2.bf16.msra.mxu0 0
        %310 = vmatprep.subr.bf16.mxu0 0
        %311 = vmatpush2.bf16.msra.mxu0 0
        %312 = vmatprep.subr.bf16.mxu0 0
        %313 = vmatpush2.bf16.msra.mxu0 0
        %314 = vmatprep.subr.bf16.mxu0 0
        %315 = vmatpush2.bf16.msra.mxu0 0
        %316 = vmatprep.subr.bf16.mxu0 0
        %317 = vmatpush2.bf16.msra.mxu0 0
        %318 = vmatprep.mubr.bf16.mxu0 0
        %319 = vmatmul.mubr.bf16.gmra.mxu0 %v280
        %v320 = vpop.f32.mrf.mxu0
        %v321 = vadd.f32 0.0, %v320
        %v322 = vpop.f32.mrf.mxu0
        %v323 = vpop.f32.mrf.mxu0
        %v324 = vadd.f32 0.0, %v323
        %v325 = vpop.f32.mrf.mxu0
        %326 = vdwg.mxu0
        %vm329 = vcmask 1040384
        %v330 = vrot.slane %v321, 7
        %v331 = vrot.slane %v324, 7
        %v332 = vsel %vm329, %v330, %v331
        %v336 = vsel %vm329, 0.0, %v330
        %v337 = vsel %vm329, %v331, 0.0
        %vm340 = vcmask 1046528
        %v341 = vrot.slane %v336, 1
        %v342 = vrot.slane %v332, 1
        %v343 = vsel %vm340, %v341, %v342
        %v344 = vrot.slane %v337, 1
        %v345 = vsel %vm340, %v342, %v344
        %346 = vrot.lane.b32.xlu0 %v343, 32
        %v347 = vpop.permute.xlu0 %346
        %348 = vrot.lane.b32.xlu0 %v345, 32
        %v349 = vpop.permute.xlu0 %348
        %vm352 = vcmask 1045504
        %v353 = vrot.slane %v336, 2
        %v354 = vrot.slane %v332, 2
        %v355 = vsel %vm352, %v353, %v354
        %v356 = vrot.slane %v337, 2
        %v357 = vsel %vm352, %v354, %v356
        %358 = vrot.lane.b32.xlu0 %v355, 64
        %v359 = vpop.permute.xlu0 %358
        %360 = vrot.lane.b32.xlu0 %v357, 64
        %v361 = vpop.permute.xlu0 %360
        %vm364 = vcmask 261120
        %v365 = vsel %vm364, %v336, %v347
        %v366 = vsel %vm364, %v332, %v349
        %vm367 = vcmask 523264
        %v368 = vsel %vm367, %v365, %v359
        %v369 = vsel %vm367, %v366, %v361
        %v370 = vpack.c.bf16 %v369, %v368
        %v371 = vld [vmem:[%s2] sm:$0xf]
        %v372 = vld [vmem:[%s2 + $0x4] sm:$0xf]
        %v373 = vld [vmem:[%s2 + $0x8] sm:$0xf]
        %v374 = vld [vmem:[%s2 + $0xc] sm:$0xf]
        %v375 = vld [vmem:[%s2 + $0x10] sm:$0xf]
        %v376 = vld [vmem:[%s2 + $0x14] sm:$0xf]
        %v377 = vld [vmem:[%s2 + $0x18] sm:$0xf]
        %v378 = vld [vmem:[%s2 + $0x1c] sm:$0xf]
        %v379 = vld [vmem:[%s2 + $0x20] sm:$0xf]
        %v380 = vld [vmem:[%s2 + $0x24] sm:$0xf]
        %v381 = vld [vmem:[%s2 + $0x28] sm:$0xf]
        %v382 = vld [vmem:[%s2 + $0x2c] sm:$0xf]
        %v383 = vld [vmem:[%s3] sm:$0x1]
        %v385 = vlaneseq
        %v386 = vshrl.u32 %v385, 7
        %v387 = vsub.s32 0, %v386
        %v388 = vrot.slane %v383, %v387
        %v402 = vunpack.c.l.b16 %v371
        %v403 = vunpack.c.l.b16 %v372
        %v404 = vunpack.c.l.b16 %v373
        %v405 = vunpack.c.l.b16 %v374
        %v406 = vunpack.c.l.b16 %v375
        %v407 = vunpack.c.l.b16 %v376
        %v408 = vunpack.c.l.b16 %v377
        %v409 = vunpack.c.l.b16 %v378
        %v410 = vunpack.c.l.b16 %v379
        %v411 = vunpack.c.l.b16 %v380
        %v412 = vunpack.c.l.b16 %v381
        %v413 = vunpack.c.l.b16 %v382
        %v414 = vpack.c.b16 %v403, %v402
        %v415 = vpack.c.b16 %v405, %v404
        %v416 = vpack.c.b16 %v407, %v406
        %v417 = vpack.c.b16 %v409, %v408
        %v418 = vpack.c.b16 %v411, %v410
        %v419 = vpack.c.b16 %v413, %v412
        %vm426 = vcmask 785408
        %v428 = vsel %vm426, %v370, 0
        %430 = vmatprep.subr.bf16.mxu0 0
        %431 = vmatpush1.bf16.msra.mxu0 0
        %432 = vmatprep.subr.bf16.mxu0 0
        %433 = vmatpush1.bf16.msra.mxu0 0
        %434 = vmatprep.subr.bf16.mxu0 0
        %435 = vmatpush1.bf16.msra.mxu0 %v419
        %436 = vmatprep.subr.bf16.mxu0 0
        %437 = vmatpush1.bf16.msra.mxu0 %v418
        %438 = vmatprep.subr.bf16.mxu0 0
        %439 = vmatpush1.bf16.msra.mxu0 %v417
        %440 = vmatprep.subr.bf16.mxu0 0
        %441 = vmatpush1.bf16.msra.mxu0 %v416
        %442 = vmatprep.subr.bf16.mxu0 0
        %443 = vmatpush1.bf16.msra.mxu0 %v415
        %444 = vmatprep.subr.bf16.mxu0 0
        %445 = vmatpush1.bf16.msra.mxu0 %v414
        %446 = vmatprep.subr.bf16.mxu0 0
        %447 = vmatpush2.bf16.msra.mxu0 0
        %448 = vmatprep.subr.bf16.mxu0 0
        %449 = vmatpush2.bf16.msra.mxu0 0
        %450 = vmatprep.subr.bf16.mxu0 0
        %451 = vmatpush2.bf16.msra.mxu0 0
        %452 = vmatprep.subr.bf16.mxu0 0
        %453 = vmatpush2.bf16.msra.mxu0 0
        %454 = vmatprep.subr.bf16.mxu0 0
        %455 = vmatpush2.bf16.msra.mxu0 0
        %456 = vmatprep.subr.bf16.mxu0 0
        %457 = vmatpush2.bf16.msra.mxu0 0
        %458 = vmatprep.subr.bf16.mxu0 0
        %459 = vmatpush2.bf16.msra.mxu0 0
        %460 = vmatprep.subr.bf16.mxu0 0
        %461 = vmatpush2.bf16.msra.mxu0 0
        %462 = vmatprep.mubr.bf16.mxu0 0
        %463 = vmatmul.mubr.bf16.gmra.mxu0 %v428
        %v464 = vpop.f32.mrf.mxu0
        %v465 = vadd.f32 %v388, %v464
        %v466 = vpop.f32.mrf.mxu0
        %v467 = vpop.f32.mrf.mxu0
        %v468 = vadd.f32 %v388, %v467
        %v469 = vpop.f32.mrf.mxu0
        %470 = vdwg.mxu0
        %v471 = vxor.u32 %v465, 2147483648
        %v472 = vxor.u32 %v468, 2147483648
        %v473 = vmul.f32 %v471, 1.442695
        %v474 = vpow.pop %v473
        %v475 = vmul.f32 %v472, 1.442695
        %v476 = vpow.pop %v475
        %v477 = vadd.f32 %v474, 1.0
        %v478 = vadd.f32 %v476, 1.0
        %v479 = vrcp.pop %v477
        %v480 = vmul.f32 1.0, %v479
        %v481 = vrcp.pop %v478
        %v482 = vmul.f32 1.0, %v481
        %485 = vrot.lane.b32.xlu0 %v480, 96
        %v486 = vpop.permute.xlu0 %485
        %487 = vrot.lane.b32.xlu0 %v482, 96
        %v488 = vpop.permute.xlu0 %487
        %v491 = vmul.f32 %v465, %v486
        %v492 = vmul.f32 %v468, %v488
        %v493 = vadd.f32 %v491, %v321
        %v494 = vadd.f32 %v492, %v324
        %v495 = vmul.f32 %v493, 0.70710677
        %v496 = vmul.f32 %v494, 0.70710677
        %v499 = vrot.slane %v495, 7
        %v500 = vrot.slane %v496, 7
        %v501 = vsel %vm329, %v499, %v500
        %v505 = vsel %vm329, 0.0, %v499
        %v506 = vsel %vm329, %v500, 0.0
        %v509 = vrot.slane %v505, 1
        %v510 = vrot.slane %v501, 1
        %v511 = vsel %vm340, %v509, %v510
        %v512 = vrot.slane %v506, 1
        %v513 = vsel %vm340, %v510, %v512
        %514 = vrot.lane.b32.xlu0 %v511, 32
        %v515 = vpop.permute.xlu0 %514
        %516 = vrot.lane.b32.xlu0 %v513, 32
        %v517 = vpop.permute.xlu0 %516
        %v520 = vrot.slane %v505, 2
        %v521 = vrot.slane %v501, 2
        %v522 = vsel %vm352, %v520, %v521
        %v523 = vrot.slane %v506, 2
        %v524 = vsel %vm352, %v521, %v523
        %525 = vrot.lane.b32.xlu0 %v522, 64
        %v526 = vpop.permute.xlu0 %525
        %527 = vrot.lane.b32.xlu0 %v524, 64
        %v528 = vpop.permute.xlu0 %527
        %v531 = vsel %vm364, %v505, %v515
        %v532 = vsel %vm364, %v501, %v517
        %v533 = vsel %vm367, %v531, %v526
        %v534 = vsel %vm367, %v532, %v528
        %v535 = vpack.c.bf16 %v534, %v533
        %s536 = scalar_lea.vmem %s2, 48
        %v537 = vld [vmem:[%s536] sm:$0xf]
        %v538 = vld [vmem:[%s536 + $0x4] sm:$0xf]
        %v539 = vld [vmem:[%s536 + $0x8] sm:$0xf]
        %v540 = vld [vmem:[%s536 + $0xc] sm:$0xf]
        %v541 = vld [vmem:[%s536 + $0x10] sm:$0xf]
        %v542 = vld [vmem:[%s536 + $0x14] sm:$0xf]
        %v543 = vld [vmem:[%s536 + $0x18] sm:$0xf]
        %v544 = vld [vmem:[%s536 + $0x1c] sm:$0xf]
        %v545 = vld [vmem:[%s536 + $0x20] sm:$0xf]
        %v546 = vld [vmem:[%s536 + $0x24] sm:$0xf]
        %v547 = vld [vmem:[%s536 + $0x28] sm:$0xf]
        %v548 = vld [vmem:[%s536 + $0x2c] sm:$0xf]
        %s549 = scalar_lea.vmem %s3, 1
        %v550 = vld [vmem:[%s549] sm:$0x1]
        %v552 = vlaneseq
        %v553 = vshrl.u32 %v552, 7
        %v554 = vsub.s32 0, %v553
        %v555 = vrot.slane %v550, %v554
        %v569 = vunpack.c.l.b16 %v537
        %v570 = vunpack.c.l.b16 %v538
        %v571 = vunpack.c.l.b16 %v539
        %v572 = vunpack.c.l.b16 %v540
        %v573 = vunpack.c.l.b16 %v541
        %v574 = vunpack.c.l.b16 %v542
        %v575 = vunpack.c.l.b16 %v543
        %v576 = vunpack.c.l.b16 %v544
        %v577 = vunpack.c.l.b16 %v545
        %v578 = vunpack.c.l.b16 %v546
        %v579 = vunpack.c.l.b16 %v547
        %v580 = vunpack.c.l.b16 %v548
        %v581 = vpack.c.b16 %v570, %v569
        %v582 = vpack.c.b16 %v572, %v571
        %v583 = vpack.c.b16 %v574, %v573
        %v584 = vpack.c.b16 %v576, %v575
        %v585 = vpack.c.b16 %v578, %v577
        %v586 = vpack.c.b16 %v580, %v579
        %v594 = vsel %vm426, %v535, 0
        %596 = vmatprep.subr.bf16.mxu0 0
        %597 = vmatpush1.bf16.msra.mxu0 0
        %598 = vmatprep.subr.bf16.mxu0 0
        %599 = vmatpush1.bf16.msra.mxu0 0
        %600 = vmatprep.subr.bf16.mxu0 0
        %601 = vmatpush1.bf16.msra.mxu0 %v586
        %602 = vmatprep.subr.bf16.mxu0 0
        %603 = vmatpush1.bf16.msra.mxu0 %v585
        %604 = vmatprep.subr.bf16.mxu0 0
        %605 = vmatpush1.bf16.msra.mxu0 %v584
        %606 = vmatprep.subr.bf16.mxu0 0
        %607 = vmatpush1.bf16.msra.mxu0 %v583
        %608 = vmatprep.subr.bf16.mxu0 0
        %609 = vmatpush1.bf16.msra.mxu0 %v582
        %610 = vmatprep.subr.bf16.mxu0 0
        %611 = vmatpush1.bf16.msra.mxu0 %v581
        %612 = vmatprep.subr.bf16.mxu0 0
        %613 = vmatpush2.bf16.msra.mxu0 0
        %614 = vmatprep.subr.bf16.mxu0 0
        %615 = vmatpush2.bf16.msra.mxu0 0
        %616 = vmatprep.subr.bf16.mxu0 0
        %617 = vmatpush2.bf16.msra.mxu0 0
        %618 = vmatprep.subr.bf16.mxu0 0
        %619 = vmatpush2.bf16.msra.mxu0 0
        %620 = vmatprep.subr.bf16.mxu0 0
        %621 = vmatpush2.bf16.msra.mxu0 0
        %622 = vmatprep.subr.bf16.mxu0 0
        %623 = vmatpush2.bf16.msra.mxu0 0
        %624 = vmatprep.subr.bf16.mxu0 0
        %625 = vmatpush2.bf16.msra.mxu0 0
        %626 = vmatprep.subr.bf16.mxu0 0
        %627 = vmatpush2.bf16.msra.mxu0 0
        %628 = vmatprep.mubr.bf16.mxu0 0
        %629 = vmatmul.mubr.bf16.gmra.mxu0 %v594
        %v630 = vpop.f32.mrf.mxu0
        %v631 = vadd.f32 %v555, %v630
        %v632 = vpop.f32.mrf.mxu0
        %v633 = vpop.f32.mrf.mxu0
        %v634 = vadd.f32 %v555, %v633
        %v635 = vpop.f32.mrf.mxu0
        %636 = vdwg.mxu0
        %v637 = vxor.u32 %v631, 2147483648
        %v638 = vxor.u32 %v634, 2147483648
        %v639 = vmul.f32 %v637, 1.442695
        %v640 = vpow.pop %v639
        %v641 = vmul.f32 %v638, 1.442695
        %v642 = vpow.pop %v641
        %v643 = vadd.f32 %v640, 1.0
        %v644 = vadd.f32 %v642, 1.0
        %v645 = vrcp.pop %v643
        %v646 = vmul.f32 1.0, %v645
        %v647 = vrcp.pop %v644
        %v648 = vmul.f32 1.0, %v647
        %651 = vrot.lane.b32.xlu0 %v646, 96
        %v652 = vpop.permute.xlu0 %651
        %653 = vrot.lane.b32.xlu0 %v648, 96
        %v654 = vpop.permute.xlu0 %653
        %v657 = vmul.f32 %v631, %v652
        %v658 = vmul.f32 %v634, %v654
        %v659 = vadd.f32 %v657, %v495
        %v660 = vadd.f32 %v658, %v496
        %v661 = vmul.f32 %v659, 0.70710677
        %v662 = vmul.f32 %v660, 0.70710677
        %v663 = vpack.c.bf16 %v662, %v661
        %v664 = vld [vmem:[%s4] sm:$0xf]
        %v665 = vld [vmem:[%s4 + $0x4] sm:$0xf]
        %v666 = vld [vmem:[%s4 + $0x8] sm:$0xf]
        %v667 = vld [vmem:[%s4 + $0xc] sm:$0xf]
        %v668 = vld [vmem:[%s5] sm:$0x1]
        %v670 = vlaneseq
        %v671 = vshrl.u32 %v670, 7
        %v672 = vsub.s32 0, %v671
        %v673 = vrot.slane %v668, %v672
        %v679 = vunpack.c.l.b16 %v664
        %v680 = vunpack.c.l.b16 %v665
        %v681 = vunpack.c.l.b16 %v666
        %v682 = vunpack.c.l.b16 %v667
        %v683 = vpack.c.b16 %v680, %v679
        %v684 = vpack.c.b16 %v682, %v681
        %v688 = vsel %vm364, %v663, 0
        %690 = vmatprep.subr.bf16.mxu0 0
        %691 = vmatpush1.bf16.msra.mxu0 0
        %692 = vmatprep.subr.bf16.mxu0 0
        %693 = vmatpush1.bf16.msra.mxu0 0
        %694 = vmatprep.subr.bf16.mxu0 0
        %695 = vmatpush1.bf16.msra.mxu0 0
        %696 = vmatprep.subr.bf16.mxu0 0
        %697 = vmatpush1.bf16.msra.mxu0 0
        %698 = vmatprep.subr.bf16.mxu0 0
        %699 = vmatpush1.bf16.msra.mxu0 0
        %700 = vmatprep.subr.bf16.mxu0 0
        %701 = vmatpush1.bf16.msra.mxu0 0
        %702 = vmatprep.subr.bf16.mxu0 0
        %703 = vmatpush1.bf16.msra.mxu0 %v684
        %704 = vmatprep.subr.bf16.mxu0 0
        %705 = vmatpush1.bf16.msra.mxu0 %v683
        %706 = vmatprep.subr.bf16.mxu0 0
        %707 = vmatpush2.bf16.msra.mxu0 0
        %708 = vmatprep.subr.bf16.mxu0 0
        %709 = vmatpush2.bf16.msra.mxu0 0
        %710 = vmatprep.subr.bf16.mxu0 0
        %711 = vmatpush2.bf16.msra.mxu0 0
        %712 = vmatprep.subr.bf16.mxu0 0
        %713 = vmatpush2.bf16.msra.mxu0 0
        %714 = vmatprep.subr.bf16.mxu0 0
        %715 = vmatpush2.bf16.msra.mxu0 0
        %716 = vmatprep.subr.bf16.mxu0 0
        %717 = vmatpush2.bf16.msra.mxu0 0
        %718 = vmatprep.subr.bf16.mxu0 0
        %719 = vmatpush2.bf16.msra.mxu0 0
        %720 = vmatprep.subr.bf16.mxu0 0
        %721 = vmatpush2.bf16.msra.mxu0 0
        %722 = vmatprep.mubr.bf16.mxu0 0
        %723 = vmatmul.mubr.bf16.gmra.mxu0 %v688
        %v724 = vpop.f32.mrf.mxu0
        %v725 = vadd.f32 %v673, %v724
        %v726 = vpop.f32.mrf.mxu0
        %v727 = vpop.f32.mrf.mxu0
        %v728 = vadd.f32 %v673, %v727
        %v729 = vpop.f32.mrf.mxu0
        %730 = vdwg.mxu0
        %731 = vst.msk [vmem:[%s244] sm:$0xff] %vm364, %v725
        %732 = vst.msk [vmem:[%s244 + $0x8] sm:$0xff] %vm364, %v728
        %s733 = sand.u32 %s159, 1
        %s734 = scalar_lea.sflag [#allocation3], %s733
        %s735 = sand.u32 %s159, 1
        %s736 = smul.addr %s735, 16
        %s737 = scalar_lea.vmem [#allocation2], %s736
        // Predicated region
        $region45: #{tpu_custom_call.1} parent=43 // pred_check
          %p738 = pneg %p169
        $region46: #{tpu_custom_call.1} parent=43 // pred_check_branch
          %740 = sbr.rel (%p738) target = $region48
        $region47: #{tpu_custom_call.1} parent=43 // pred_region
          %s742 = ssub.s32 256, 256
          %743 = vsyncadd %s734, %s742
          %s744 = smul.addr %s20, 2
          %s745 = smul.addr %s744, 128
          %s746 = scalar_lea.hbm %s6, %s745
          %s747 = sshll.u32 %s737, 4
          %s748 = int_to_ptr.vmem [resolvable:$true] %s747
          %753 = dma.vmem_to_hbm [thread:$0]  %s748, 256, %s746, %s734, 128, 128, 8
        $region48: #{tpu_custom_call.1} parent=43 // pred_fallthru
          _
      $region44: #{tpu_custom_call.1} parent=5 // pred_fallthru
        _
      %p754 = scmp.le.s32.totalorder 2, %s15
      // Predicated region
      $region49: #{tpu_custom_call.1} parent=5 // pred_check
        %p755 = pneg %p754
      $region50: #{tpu_custom_call.1} parent=5 // pred_check_branch
        %757 = sbr.rel (%p755) target = $region52
      $region51: #{tpu_custom_call.1} parent=5 // pred_region
        %s758 = ssub.s32 %s15, 2
        // Predicated region
        $region53: #{tpu_custom_call.1} parent=51 // pred_check
          %p759 = pneg %p175
        $region54: #{tpu_custom_call.1} parent=51 // pred_check_branch
          %761 = sbr.rel (%p759) target = $region56
        $region55: #{tpu_custom_call.1} parent=51 // pred_region
          %s762 = sand.u32 %s160, 1
          %s763 = scalar_lea.sflag [#allocation3], %s762
          %s764 = sand.u32 %s160, 1
          %s765 = smul.addr %s764, 16
          %s766 = scalar_lea.vmem [#allocation2], %s765
          %767 = dma.done %s763, 256
        $region56: #{tpu_custom_call.1} parent=51 // pred_fallthru
          _
      $region52: #{tpu_custom_call.1} parent=5 // pred_fallthru
        _
    $region6: #{tpu_custom_call.1} parent=1 // loop_footer
      %s19 = sadd.s32 1, %s15
    $region7: #{tpu_custom_call.1} parent=1 // loop_footer_branch
      %14 = sbr.rel target = $region3
    $region8: #{tpu_custom_call.1} parent=1 // loop_exit
      _
    %768 = vsyncpa [#allocation3], 1
    %s769 = scalar_lea.sflag [#allocation3], 1
    %770 = vsyncpa %s769, 1

</llo_original>
